<compile_context>
chip_gen: v6e
topology: v6e:2x2x1
jax: 0.10.0
libtpu: 0.0.40
codegen_flags: <defaults>
</compile_context>

<pallas_src>
from functools import partial

import numpy as np
import jax
import jax.numpy as jnp
from jax import lax
from jax.experimental import pallas as pl
from jax.experimental.pallas import tpu as pltpu


# ----------------------------------------------------------------------------- kernel
def _make_mha_kernel(n_heads: int, d_k: int, scale: float, eps: float,
                     apply_dropout: bool):
    inv_scale = 1.0 / float(scale)
    d_model = n_heads * d_k

    def kernel(x_ref, mask_ref,
               wqkv_ref, bqkv_ref, wo_ref, bo_ref, gamma_ref, beta_ref, *rest):
        if apply_dropout:
            att_keep_ref, out_keep_ref, out_ref, att_ref = rest
        else:
            out_ref, att_ref = rest

        x = x_ref[0].astype(jnp.float32)          # (L, D)
        m = mask_ref[0].astype(jnp.float32)       # (1, L)  key-padding mask

        # Fused QKV projection: one lane-dense (L, D) @ (D, 3D) MXU matmul.
        qkv = (jnp.dot(x, wqkv_ref[...], preferred_element_type=jnp.float32)
               + bqkv_ref[...])                   # (L, 3D)

        neg_inf = jnp.float32(-1e9)
        is_pad = (m == 0.0)                       # (1, L), hoisted out of head loop

        ctx_parts = []
        for h in range(n_heads):                  # short static loop over heads
            q_sl = slice(h * d_k, (h + 1) * d_k)
            k_sl = slice(d_model + h * d_k, d_model + (h + 1) * d_k)
            v_sl = slice(2 * d_model + h * d_k, 2 * d_model + (h + 1) * d_k)

            qh = qkv[:, q_sl] * inv_scale          # (L, d_k)
            kh = qkv[:, k_sl]
            vh = qkv[:, v_sl]

            # (Q/scale) @ K^T without materializing a transpose.
            s = lax.dot_general(qh, kh, (((1,), (1,)), ((), ())),
                                preferred_element_type=jnp.float32)   # (L, L)
            s = jnp.where(is_pad, neg_inf, s)      # mask padded keys (bcast over rows)
            s = s - jnp.max(s, axis=-1, keepdims=True)
            p = jnp.exp(s)
            inv_l = pl.reciprocal(jnp.sum(p, axis=-1, keepdims=True), approx=True)
            a = p * inv_l
            if apply_dropout:
                a = a * att_keep_ref[0, h]         # pre-scaled keep mask (0 or 1/(1-p))
            att_ref[0, h] = a.astype(att_ref.dtype)   # module returns post-dropout att
            ctx_parts.append(jnp.dot(a, vh, preferred_element_type=jnp.float32))

        context = jnp.concatenate(ctx_parts, axis=-1)                 # (L, D)

        out = (jnp.dot(context, wo_ref[...], preferred_element_type=jnp.float32)
               + bo_ref[...])
        if apply_dropout:
            out = out * out_keep_ref[0]
        out = out + x                                                 # residual

        # LayerNorm over the feature dim (eps matches nn.LayerNorm default).
        mean = jnp.mean(out, axis=-1, keepdims=True)
        var = jnp.mean(jnp.square(out - mean), axis=-1, keepdims=True)
        out = (out - mean) * lax.rsqrt(var + jnp.float32(eps))
        out = out * gamma_ref[...] + beta_ref[...]

        out_ref[0] = out.astype(out_ref.dtype)

    return kernel


# ----------------------------------------------------------------------------- wrapper
def multi_head_attention_forward(x, mask, params, *, n_heads: int,
                                 dropout_rate: float = 0.5,
                                 training: bool = False,
                                 rng_key=None):
    """x: (B, L, D) f32; mask: (B, 1, L) -> (out (B,L,D), att (B,H,L,L))."""
    B, L, D = x.shape
    assert D % n_heads == 0
    d_k = D // n_heads
    scale = float(d_k) ** 0.5
    apply_dropout = bool(training) and float(dropout_rate) > 0.0

    mask = mask.reshape(B, 1, L).astype(jnp.float32)

    # Fuse the three projection weights into one wide matmul operand.
    wqkv = jnp.concatenate([params["wq"], params["wk"], params["wv"]], axis=1)  # (D, 3D)
    bqkv = jnp.concatenate([params["bq"], params["bk"], params["bv"]], axis=1)  # (1, 3D)

    inputs = [x, mask, wqkv, bqkv,
              params["wo"], params["bo"],
              params["gamma"], params["beta"]]

    const2d = lambda b: (0, 0)
    in_specs = [
        pl.BlockSpec((1, L, D), lambda b: (b, 0, 0)),                      # x
        pl.BlockSpec((1, 1, L), lambda b: (b, 0, 0)),                      # mask
        pl.BlockSpec((D, 3 * D), const2d), pl.BlockSpec((1, 3 * D), const2d),  # Wqkv, bqkv
        pl.BlockSpec((D, D), const2d), pl.BlockSpec((1, D), const2d),      # Wo, bo
        pl.BlockSpec((1, D), const2d), pl.BlockSpec((1, D), const2d),      # gamma, beta
    ]

    if apply_dropout:
        if rng_key is None:
            rng_key = jax.random.PRNGKey(0)
        k_att, k_out = jax.random.split(rng_key)
        keep_p = 1.0 - float(dropout_rate)
        att_keep = (jax.random.bernoulli(k_att, keep_p, (B, n_heads, L, L))
                    .astype(jnp.float32) / keep_p)
        out_keep = (jax.random.bernoulli(k_out, keep_p, (B, L, D))
                    .astype(jnp.float32) / keep_p)
        inputs += [att_keep, out_keep]
        in_specs += [
            pl.BlockSpec((1, n_heads, L, L), lambda b: (b, 0, 0, 0)),
            pl.BlockSpec((1, L, D), lambda b: (b, 0, 0)),
        ]

    out_specs = [
        pl.BlockSpec((1, L, D), lambda b: (b, 0, 0)),
        pl.BlockSpec((1, n_heads, L, L), lambda b: (b, 0, 0, 0)),
    ]
    out_shape = (jax.ShapeDtypeStruct((B, L, D), x.dtype),
                 jax.ShapeDtypeStruct((B, n_heads, L, L), jnp.float32))

    # Advisory cost model: QKV + output projections + 2 attention matmuls per head.
    flops = B * (8 * L * D * D + 4 * L * L * D)
    transcendentals = B * n_heads * L * L                      # softmax exp
    bytes_accessed = 4 * (2 * B * L * D + 2 * B * n_heads * L * L
                          + 4 * D * D + 6 * D + B * L)
    if apply_dropout:
        bytes_accessed += 4 * (B * n_heads * L * L + B * L * D)

    kernel = _make_mha_kernel(n_heads, d_k, scale, 1e-5, apply_dropout)

    out, att = pl.pallas_call(
        kernel,
        out_shape=out_shape,
        grid_spec=pltpu.PrefetchScalarGridSpec(
            num_scalar_prefetch=0,
            grid=(B,),
            in_specs=in_specs,
            out_specs=out_specs,
        ),
        compiler_params=pltpu.CompilerParams(
            dimension_semantics=("parallel",),   # batch elements are independent
        ),
        cost_estimate=pl.CostEstimate(flops=flops,
                                      transcendentals=transcendentals,
                                      bytes_accessed=bytes_accessed),
    )(*inputs)
    return out, att


# ----------------------------------------------------------------------------- params / reference
def init_params(key, d_model: int):
    ks = jax.random.split(key, 8)
    bound = 1.0 / float(np.sqrt(d_model))

    def lin(kw, kb):
        w = jax.random.uniform(kw, (d_model, d_model), jnp.float32, -bound, bound)
        b = jax.random.uniform(kb, (1, d_model), jnp.float32, -bound, bound)
        return w, b                      # (in, out) layout: kernel computes x @ W + b

    wq, bq = lin(ks[0], ks[1])
    wk, bk = lin(ks[2], ks[3])
    wv, bv = lin(ks[4], ks[5])
    wo, bo = lin(ks[6], ks[7])
    return dict(wq=wq, bq=bq, wk=wk, bk=bk, wv=wv, bv=bv, wo=wo, bo=bo,
                gamma=jnp.ones((1, d_model), jnp.float32),
                beta=jnp.zeros((1, d_model), jnp.float32))


def mha_reference(x, mask, params, n_heads: int):
    """Pure-JAX reference of the PyTorch forward (eval mode, dropout off)."""
    B, L, D = x.shape
    d_k = D // n_heads
    scale = float(d_k) ** 0.5

    q = x @ params["wq"] + params["bq"]
    k = x @ params["wk"] + params["bk"]
    v = x @ params["wv"] + params["bv"]

    def split(t):
        return t.reshape(B, L, n_heads, d_k).transpose(0, 2, 1, 3)

    q, k, v = split(q), split(k), split(v)
    att = jnp.einsum("bhqd,bhkd->bhqk", q * (1.0 / scale), k)
    att = jnp.where(mask.reshape(B, 1, 1, L) == 0, -1e9, att)
    att = jax.nn.softmax(att, axis=-1)
    ctx = jnp.einsum("bhqk,bhkd->bhqd", att, v)
    ctx = ctx.transpose(0, 2, 1, 3).reshape(B, L, D)
    out = ctx @ params["wo"] + params["bo"] + x
    mean = out.mean(-1, keepdims=True)
    var = ((out - mean) ** 2).mean(-1, keepdims=True)
    out = (out - mean) / jnp.sqrt(var + 1e-5) * params["gamma"] + params["beta"]
    return out, att


# ----------------------------------------------------------------------------- demo
if __name__ == "__main__":
    batch, word_pad_len, d_model, n_heads = 2, 8, 32, 4
    dropout = 0.5

    key = jax.random.PRNGKey(0)
    kx, kp, kd = jax.random.split(key, 3)
    x = jax.random.normal(kx, (batch, word_pad_len, d_model), dtype=jnp.float32)
    params = init_params(kp, d_model)

    # Padding mask: batch 0 fully valid; batch 1 has its last two tokens padded.
    mask_np = np.ones((batch, 1, word_pad_len), dtype=np.int32)
    mask_np[1, 0, -2:] = 0
    mask = jnp.asarray(mask_np)

    # 1) Eval mode (dropout disabled): compare against the pure-JAX reference.
    out, att = multi_head_attention_forward(x, mask, params, n_heads=n_heads,
                                            dropout_rate=dropout, training=False)
    out = jax.block_until_ready(out)
    att = jax.block_until_ready(att)
    out_ref, att_ref = mha_reference(x, mask, params, n_heads)
    np.testing.assert_allclose(np.asarray(out), np.asarray(out_ref),
                               rtol=2e-2, atol=2e-2)
    np.testing.assert_allclose(np.asarray(att), np.asarray(att_ref),
                               rtol=2e-2, atol=2e-2)

    # 2) Training mode: inverted dropout with host-generated keep masks.
    out_tr, att_tr = multi_head_attention_forward(x, mask, params, n_heads=n_heads,
                                                  dropout_rate=dropout,
                                                  training=True, rng_key=kd)
    out_tr = jax.block_until_ready(out_tr)
    att_tr = jax.block_until_ready(att_tr)
    assert out_tr.shape == (batch, word_pad_len, d_model)
    assert att_tr.shape == (batch, n_heads, word_pad_len, word_pad_len)
    assert bool(jnp.all(jnp.isfinite(out_tr)))

    print("KERNEL_OK")
</pallas_src>

<mosaic_0001>
module attributes {stable_mosaic.version = 11 : i64} {
  func.func @kernel(%arg0: i32, %arg1: memref<1x8x32xf32, #tpu.memory_space<vmem>>, %arg2: memref<1x1x8xf32, #tpu.memory_space<vmem>>, %arg3: memref<32x96xf32, #tpu.memory_space<vmem>>, %arg4: memref<1x96xf32, #tpu.memory_space<vmem>>, %arg5: memref<32x32xf32, #tpu.memory_space<vmem>>, %arg6: memref<1x32xf32, #tpu.memory_space<vmem>>, %arg7: memref<1x32xf32, #tpu.memory_space<vmem>>, %arg8: memref<1x32xf32, #tpu.memory_space<vmem>>, %arg9: memref<1x8x32xf32, #tpu.memory_space<vmem>>, %arg10: memref<1x4x8x8xf32, #tpu.memory_space<vmem>>) attributes {dimension_semantics = [#tpu.dimension_semantics<parallel>], iteration_bounds = array<i64: 2>, scalar_prefetch = 0 : i64, scratch_operands = 0 : i64, tpu.core_type = #tpu.core_type<tc>, window_params = [{transform_indices = @transform_0, window_bounds = array<i64: 1, 8, 32>}, {transform_indices = @transform_1, window_bounds = array<i64: 1, 1, 8>}, {pipeline_mode = #tpu.pipeline_mode<synchronous>, transform_indices = @transform_2, window_bounds = array<i64: 32, 96>}, {pipeline_mode = #tpu.pipeline_mode<synchronous>, transform_indices = @transform_3, window_bounds = array<i64: 1, 96>}, {pipeline_mode = #tpu.pipeline_mode<synchronous>, transform_indices = @transform_4, window_bounds = array<i64: 32, 32>}, {pipeline_mode = #tpu.pipeline_mode<synchronous>, transform_indices = @transform_5, window_bounds = array<i64: 1, 32>}, {pipeline_mode = #tpu.pipeline_mode<synchronous>, transform_indices = @transform_6, window_bounds = array<i64: 1, 32>}, {pipeline_mode = #tpu.pipeline_mode<synchronous>, transform_indices = @transform_7, window_bounds = array<i64: 1, 32>}, {transform_indices = @transform_8, window_bounds = array<i64: 1, 8, 32>}, {transform_indices = @transform_9, window_bounds = array<i64: 1, 4, 8, 8>}]} {
    %c0 = arith.constant 0 : index
    %c0_0 = arith.constant 0 : index
    %c0_1 = arith.constant 0 : index
    %0 = vector.load %arg1[%c0, %c0_0, %c0_1] : memref<1x8x32xf32, #tpu.memory_space<vmem>>, vector<1x8x32xf32>
    %1 = vector.shape_cast %0 : vector<1x8x32xf32> to vector<8x32xf32>
    %c0_2 = arith.constant 0 : index
    %c0_3 = arith.constant 0 : index
    %c0_4 = arith.constant 0 : index
    %2 = vector.load %arg2[%c0_2, %c0_3, %c0_4] : memref<1x1x8xf32, #tpu.memory_space<vmem>>, vector<1x1x8xf32>
    %3 = vector.shape_cast %2 : vector<1x1x8xf32> to vector<1x8xf32>
    %c0_5 = arith.constant 0 : index
    %c0_6 = arith.constant 0 : index
    %4 = vector.load %arg3[%c0_5, %c0_6] : memref<32x96xf32, #tpu.memory_space<vmem>>, vector<32x96xf32>
    %cst = arith.constant dense<0.000000e+00> : vector<8x96xf32>
    %5 = tpu.matmul %1, %4, %cst {dimension_numbers = #tpu.dot_dimension_numbers<[1], [0], [0], [1], [0, 0, 1, 1], [], []>} : vector<8x32xf32>, vector<32x96xf32>, vector<8x96xf32> -> vector<8x96xf32>
    %c0_7 = arith.constant 0 : index
    %c0_8 = arith.constant 0 : index
    %6 = vector.load %arg4[%c0_7, %c0_8] : memref<1x96xf32, #tpu.memory_space<vmem>>, vector<1x96xf32>
    %7 = vector.broadcast %6 : vector<1x96xf32> to vector<8x96xf32>
    %8 = arith.addf %5, %7 : vector<8x96xf32>
    %cst_9 = arith.constant 0.000000e+00 : f32
    %9 = vector.broadcast %cst_9 : f32 to vector<1x8xf32>
    %10 = arith.cmpf oeq, %3, %9 : vector<1x8xf32>
    %11 = vector.extract_strided_slice %8 {offsets = [0, 0], sizes = [8, 8], strides = [1, 1]} : vector<8x96xf32> to vector<8x8xf32>
    %cst_10 = arith.constant 0.353553385 : f32
    %12 = vector.broadcast %cst_10 : f32 to vector<8x8xf32>
    %13 = arith.mulf %11, %12 : vector<8x8xf32>
    %14 = vector.extract_strided_slice %8 {offsets = [0, 32], sizes = [8, 8], strides = [1, 1]} : vector<8x96xf32> to vector<8x8xf32>
    %15 = vector.extract_strided_slice %8 {offsets = [0, 64], sizes = [8, 8], strides = [1, 1]} : vector<8x96xf32> to vector<8x8xf32>
    %cst_11 = arith.constant dense<0.000000e+00> : vector<8x8xf32>
    %16 = tpu.matmul %13, %14, %cst_11 {dimension_numbers = #tpu.dot_dimension_numbers<[1], [1], [0], [0], [0, 0, 1, 0], [], []>} : vector<8x8xf32>, vector<8x8xf32>, vector<8x8xf32> -> vector<8x8xf32>
    %cst_12 = arith.constant -1.000000e+09 : f32
    %17 = vector.shape_cast %10 : vector<1x8xi1> to vector<1x8xi1>
    %18 = vector.broadcast %17 : vector<1x8xi1> to vector<8x8xi1>
    %19 = vector.broadcast %cst_12 : f32 to vector<8x8xf32>
    %20 = arith.select %18, %19, %16 : vector<8x8xi1>, vector<8x8xf32>
    %cst_13 = arith.constant dense<0xFF800000> : vector<8xf32>
    %21 = vector.multi_reduction <maximumf>, %20, %cst_13 [1] : vector<8x8xf32> to vector<8xf32>
    %22 = vector.shape_cast %21 : vector<8xf32> to vector<8x1xf32>
    %23 = vector.broadcast %22 : vector<8x1xf32> to vector<8x8xf32>
    %24 = arith.subf %20, %23 : vector<8x8xf32>
    %25 = math.exp %24 : vector<8x8xf32>
    %cst_14 = arith.constant dense<0.000000e+00> : vector<8xf32>
    %26 = vector.multi_reduction <add>, %25, %cst_14 [1] : vector<8x8xf32> to vector<8xf32>
    %27 = vector.shape_cast %26 : vector<8xf32> to vector<8x1xf32>
    %28 = tpu.reciprocal %27 {approx = true} : vector<8x1xf32> -> vector<8x1xf32>
    %29 = vector.broadcast %28 : vector<8x1xf32> to vector<8x8xf32>
    %30 = arith.mulf %25, %29 : vector<8x8xf32>
    %c0_15 = arith.constant 0 : index
    %c0_16 = arith.constant 0 : index
    %c0_17 = arith.constant 0 : index
    %c0_18 = arith.constant 0 : index
    %31 = vector.load %arg10[%c0_15, %c0_16, %c0_17, %c0_18] : memref<1x4x8x8xf32, #tpu.memory_space<vmem>>, vector<1x1x8x8xf32>
    %32 = vector.shape_cast %31 : vector<1x1x8x8xf32> to vector<8x8xf32>
    %33 = vector.shape_cast %30 : vector<8x8xf32> to vector<1x1x8x8xf32>
    tpu.vector_store %arg10[%c0_15, %c0_16, %c0_17, %c0_18], %33 {strides = array<i32>} : memref<1x4x8x8xf32, #tpu.memory_space<vmem>>, vector<1x1x8x8xf32>,
    %cst_19 = arith.constant dense<0.000000e+00> : vector<8x8xf32>
    %34 = tpu.matmul %30, %15, %cst_19 {dimension_numbers = #tpu.dot_dimension_numbers<[1], [0], [0], [1], [0, 0, 1, 1], [], []>} : vector<8x8xf32>, vector<8x8xf32>, vector<8x8xf32> -> vector<8x8xf32>
    %35 = vector.extract_strided_slice %8 {offsets = [0, 8], sizes = [8, 8], strides = [1, 1]} : vector<8x96xf32> to vector<8x8xf32>
    %cst_20 = arith.constant 0.353553385 : f32
    %36 = vector.broadcast %cst_20 : f32 to vector<8x8xf32>
    %37 = arith.mulf %35, %36 : vector<8x8xf32>
    %38 = vector.extract_strided_slice %8 {offsets = [0, 40], sizes = [8, 8], strides = [1, 1]} : vector<8x96xf32> to vector<8x8xf32>
    %39 = vector.extract_strided_slice %8 {offsets = [0, 72], sizes = [8, 8], strides = [1, 1]} : vector<8x96xf32> to vector<8x8xf32>
    %cst_21 = arith.constant dense<0.000000e+00> : vector<8x8xf32>
    %40 = tpu.matmul %37, %38, %cst_21 {dimension_numbers = #tpu.dot_dimension_numbers<[1], [1], [0], [0], [0, 0, 1, 0], [], []>} : vector<8x8xf32>, vector<8x8xf32>, vector<8x8xf32> -> vector<8x8xf32>
    %cst_22 = arith.constant -1.000000e+09 : f32
    %41 = vector.shape_cast %10 : vector<1x8xi1> to vector<1x8xi1>
    %42 = vector.broadcast %41 : vector<1x8xi1> to vector<8x8xi1>
    %43 = vector.broadcast %cst_22 : f32 to vector<8x8xf32>
    %44 = arith.select %42, %43, %40 : vector<8x8xi1>, vector<8x8xf32>
    %cst_23 = arith.constant dense<0xFF800000> : vector<8xf32>
    %45 = vector.multi_reduction <maximumf>, %44, %cst_23 [1] : vector<8x8xf32> to vector<8xf32>
    %46 = vector.shape_cast %45 : vector<8xf32> to vector<8x1xf32>
    %47 = vector.broadcast %46 : vector<8x1xf32> to vector<8x8xf32>
    %48 = arith.subf %44, %47 : vector<8x8xf32>
    %49 = math.exp %48 : vector<8x8xf32>
    %cst_24 = arith.constant dense<0.000000e+00> : vector<8xf32>
    %50 = vector.multi_reduction <add>, %49, %cst_24 [1] : vector<8x8xf32> to vector<8xf32>
    %51 = vector.shape_cast %50 : vector<8xf32> to vector<8x1xf32>
    %52 = tpu.reciprocal %51 {approx = true} : vector<8x1xf32> -> vector<8x1xf32>
    %53 = vector.broadcast %52 : vector<8x1xf32> to vector<8x8xf32>
    %54 = arith.mulf %49, %53 : vector<8x8xf32>
    %c0_25 = arith.constant 0 : index
    %c1 = arith.constant 1 : index
    %c0_26 = arith.constant 0 : index
    %c0_27 = arith.constant 0 : index
    %55 = vector.load %arg10[%c0_25, %c1, %c0_26, %c0_27] : memref<1x4x8x8xf32, #tpu.memory_space<vmem>>, vector<1x1x8x8xf32>
    %56 = vector.shape_cast %55 : vector<1x1x8x8xf32> to vector<8x8xf32>
    %57 = vector.shape_cast %54 : vector<8x8xf32> to vector<1x1x8x8xf32>
    tpu.vector_store %arg10[%c0_25, %c1, %c0_26, %c0_27], %57 {strides = array<i32>} : memref<1x4x8x8xf32, #tpu.memory_space<vmem>>, vector<1x1x8x8xf32>,
    %cst_28 = arith.constant dense<0.000000e+00> : vector<8x8xf32>
    %58 = tpu.matmul %54, %39, %cst_28 {dimension_numbers = #tpu.dot_dimension_numbers<[1], [0], [0], [1], [0, 0, 1, 1], [], []>} : vector<8x8xf32>, vector<8x8xf32>, vector<8x8xf32> -> vector<8x8xf32>
    %59 = vector.extract_strided_slice %8 {offsets = [0, 16], sizes = [8, 8], strides = [1, 1]} : vector<8x96xf32> to vector<8x8xf32>
    %cst_29 = arith.constant 0.353553385 : f32
    %60 = vector.broadcast %cst_29 : f32 to vector<8x8xf32>
    %61 = arith.mulf %59, %60 : vector<8x8xf32>
    %62 = vector.extract_strided_slice %8 {offsets = [0, 48], sizes = [8, 8], strides = [1, 1]} : vector<8x96xf32> to vector<8x8xf32>
    %63 = vector.extract_strided_slice %8 {offsets = [0, 80], sizes = [8, 8], strides = [1, 1]} : vector<8x96xf32> to vector<8x8xf32>
    %cst_30 = arith.constant dense<0.000000e+00> : vector<8x8xf32>
    %64 = tpu.matmul %61, %62, %cst_30 {dimension_numbers = #tpu.dot_dimension_numbers<[1], [1], [0], [0], [0, 0, 1, 0], [], []>} : vector<8x8xf32>, vector<8x8xf32>, vector<8x8xf32> -> vector<8x8xf32>
    %cst_31 = arith.constant -1.000000e+09 : f32
    %65 = vector.shape_cast %10 : vector<1x8xi1> to vector<1x8xi1>
    %66 = vector.broadcast %65 : vector<1x8xi1> to vector<8x8xi1>
    %67 = vector.broadcast %cst_31 : f32 to vector<8x8xf32>
    %68 = arith.select %66, %67, %64 : vector<8x8xi1>, vector<8x8xf32>
    %cst_32 = arith.constant dense<0xFF800000> : vector<8xf32>
    %69 = vector.multi_reduction <maximumf>, %68, %cst_32 [1] : vector<8x8xf32> to vector<8xf32>
    %70 = vector.shape_cast %69 : vector<8xf32> to vector<8x1xf32>
    %71 = vector.broadcast %70 : vector<8x1xf32> to vector<8x8xf32>
    %72 = arith.subf %68, %71 : vector<8x8xf32>
    %73 = math.exp %72 : vector<8x8xf32>
    %cst_33 = arith.constant dense<0.000000e+00> : vector<8xf32>
    %74 = vector.multi_reduction <add>, %73, %cst_33 [1] : vector<8x8xf32> to vector<8xf32>
    %75 = vector.shape_cast %74 : vector<8xf32> to vector<8x1xf32>
    %76 = tpu.reciprocal %75 {approx = true} : vector<8x1xf32> -> vector<8x1xf32>
    %77 = vector.broadcast %76 : vector<8x1xf32> to vector<8x8xf32>
    %78 = arith.mulf %73, %77 : vector<8x8xf32>
    %c0_34 = arith.constant 0 : index
    %c2 = arith.constant 2 : index
    %c0_35 = arith.constant 0 : index
    %c0_36 = arith.constant 0 : index
    %79 = vector.load %arg10[%c0_34, %c2, %c0_35, %c0_36] : memref<1x4x8x8xf32, #tpu.memory_space<vmem>>, vector<1x1x8x8xf32>
    %80 = vector.shape_cast %79 : vector<1x1x8x8xf32> to vector<8x8xf32>
    %81 = vector.shape_cast %78 : vector<8x8xf32> to vector<1x1x8x8xf32>
    tpu.vector_store %arg10[%c0_34, %c2, %c0_35, %c0_36], %81 {strides = array<i32>} : memref<1x4x8x8xf32, #tpu.memory_space<vmem>>, vector<1x1x8x8xf32>,
    %cst_37 = arith.constant dense<0.000000e+00> : vector<8x8xf32>
    %82 = tpu.matmul %78, %63, %cst_37 {dimension_numbers = #tpu.dot_dimension_numbers<[1], [0], [0], [1], [0, 0, 1, 1], [], []>} : vector<8x8xf32>, vector<8x8xf32>, vector<8x8xf32> -> vector<8x8xf32>
    %83 = vector.extract_strided_slice %8 {offsets = [0, 24], sizes = [8, 8], strides = [1, 1]} : vector<8x96xf32> to vector<8x8xf32>
    %cst_38 = arith.constant 0.353553385 : f32
    %84 = vector.broadcast %cst_38 : f32 to vector<8x8xf32>
    %85 = arith.mulf %83, %84 : vector<8x8xf32>
    %86 = vector.extract_strided_slice %8 {offsets = [0, 56], sizes = [8, 8], strides = [1, 1]} : vector<8x96xf32> to vector<8x8xf32>
    %87 = vector.extract_strided_slice %8 {offsets = [0, 88], sizes = [8, 8], strides = [1, 1]} : vector<8x96xf32> to vector<8x8xf32>
    %cst_39 = arith.constant dense<0.000000e+00> : vector<8x8xf32>
    %88 = tpu.matmul %85, %86, %cst_39 {dimension_numbers = #tpu.dot_dimension_numbers<[1], [1], [0], [0], [0, 0, 1, 0], [], []>} : vector<8x8xf32>, vector<8x8xf32>, vector<8x8xf32> -> vector<8x8xf32>
    %cst_40 = arith.constant -1.000000e+09 : f32
    %89 = vector.shape_cast %10 : vector<1x8xi1> to vector<1x8xi1>
    %90 = vector.broadcast %89 : vector<1x8xi1> to vector<8x8xi1>
    %91 = vector.broadcast %cst_40 : f32 to vector<8x8xf32>
    %92 = arith.select %90, %91, %88 : vector<8x8xi1>, vector<8x8xf32>
    %cst_41 = arith.constant dense<0xFF800000> : vector<8xf32>
    %93 = vector.multi_reduction <maximumf>, %92, %cst_41 [1] : vector<8x8xf32> to vector<8xf32>
    %94 = vector.shape_cast %93 : vector<8xf32> to vector<8x1xf32>
    %95 = vector.broadcast %94 : vector<8x1xf32> to vector<8x8xf32>
    %96 = arith.subf %92, %95 : vector<8x8xf32>
    %97 = math.exp %96 : vector<8x8xf32>
    %cst_42 = arith.constant dense<0.000000e+00> : vector<8xf32>
    %98 = vector.multi_reduction <add>, %97, %cst_42 [1] : vector<8x8xf32> to vector<8xf32>
    %99 = vector.shape_cast %98 : vector<8xf32> to vector<8x1xf32>
    %100 = tpu.reciprocal %99 {approx = true} : vector<8x1xf32> -> vector<8x1xf32>
    %101 = vector.broadcast %100 : vector<8x1xf32> to vector<8x8xf32>
    %102 = arith.mulf %97, %101 : vector<8x8xf32>
    %c0_43 = arith.constant 0 : index
    %c3 = arith.constant 3 : index
    %c0_44 = arith.constant 0 : index
    %c0_45 = arith.constant 0 : index
    %103 = vector.load %arg10[%c0_43, %c3, %c0_44, %c0_45] : memref<1x4x8x8xf32, #tpu.memory_space<vmem>>, vector<1x1x8x8xf32>
    %104 = vector.shape_cast %103 : vector<1x1x8x8xf32> to vector<8x8xf32>
    %105 = vector.shape_cast %102 : vector<8x8xf32> to vector<1x1x8x8xf32>
    tpu.vector_store %arg10[%c0_43, %c3, %c0_44, %c0_45], %105 {strides = array<i32>} : memref<1x4x8x8xf32, #tpu.memory_space<vmem>>, vector<1x1x8x8xf32>,
    %cst_46 = arith.constant dense<0.000000e+00> : vector<8x8xf32>
    %106 = tpu.matmul %102, %87, %cst_46 {dimension_numbers = #tpu.dot_dimension_numbers<[1], [0], [0], [1], [0, 0, 1, 1], [], []>} : vector<8x8xf32>, vector<8x8xf32>, vector<8x8xf32> -> vector<8x8xf32>
    %107 = tpu.concatenate %34, %58, %82, %106 in 1 : vector<8x8xf32>, vector<8x8xf32>, vector<8x8xf32>, vector<8x8xf32> -> vector<8x32xf32>
    %c0_47 = arith.constant 0 : index
    %c0_48 = arith.constant 0 : index
    %108 = vector.load %arg5[%c0_47, %c0_48] : memref<32x32xf32, #tpu.memory_space<vmem>>, vector<32x32xf32>
    %cst_49 = arith.constant dense<0.000000e+00> : vector<8x32xf32>
    %109 = tpu.matmul %107, %108, %cst_49 {dimension_numbers = #tpu.dot_dimension_numbers<[1], [0], [0], [1], [0, 0, 1, 1], [], []>} : vector<8x32xf32>, vector<32x32xf32>, vector<8x32xf32> -> vector<8x32xf32>
    %c0_50 = arith.constant 0 : index
    %c0_51 = arith.constant 0 : index
    %110 = vector.load %arg6[%c0_50, %c0_51] : memref<1x32xf32, #tpu.memory_space<vmem>>, vector<1x32xf32>
    %111 = vector.broadcast %110 : vector<1x32xf32> to vector<8x32xf32>
    %112 = arith.addf %109, %111 : vector<8x32xf32>
    %113 = arith.addf %112, %1 : vector<8x32xf32>
    %cst_52 = arith.constant dense<0.000000e+00> : vector<8xf32>
    %114 = vector.multi_reduction <add>, %113, %cst_52 [1] : vector<8x32xf32> to vector<8xf32>
    %115 = vector.shape_cast %114 : vector<8xf32> to vector<8x1xf32>
    %cst_53 = arith.constant 3.200000e+01 : f32
    %116 = vector.broadcast %cst_53 : f32 to vector<8x1xf32>
    %117 = arith.divf %115, %116 : vector<8x1xf32>
    %118 = vector.broadcast %117 : vector<8x1xf32> to vector<8x32xf32>
    %119 = arith.subf %113, %118 : vector<8x32xf32>
    %120 = arith.mulf %119, %119 : vector<8x32xf32>
    %cst_54 = arith.constant dense<0.000000e+00> : vector<8xf32>
    %121 = vector.multi_reduction <add>, %120, %cst_54 [1] : vector<8x32xf32> to vector<8xf32>
    %122 = vector.shape_cast %121 : vector<8xf32> to vector<8x1xf32>
    %cst_55 = arith.constant 3.200000e+01 : f32
    %123 = vector.broadcast %cst_55 : f32 to vector<8x1xf32>
    %124 = arith.divf %122, %123 : vector<8x1xf32>
    %125 = vector.broadcast %117 : vector<8x1xf32> to vector<8x32xf32>
    %126 = arith.subf %113, %125 : vector<8x32xf32>
    %cst_56 = arith.constant 9.99999974E-6 : f32
    %127 = vector.broadcast %cst_56 : f32 to vector<8x1xf32>
    %128 = arith.addf %124, %127 : vector<8x1xf32>
    %129 = math.rsqrt %128 : vector<8x1xf32>
    %130 = vector.broadcast %129 : vector<8x1xf32> to vector<8x32xf32>
    %131 = arith.mulf %126, %130 : vector<8x32xf32>
    %c0_57 = arith.constant 0 : index
    %c0_58 = arith.constant 0 : index
    %132 = vector.load %arg7[%c0_57, %c0_58] : memref<1x32xf32, #tpu.memory_space<vmem>>, vector<1x32xf32>
    %133 = vector.broadcast %132 : vector<1x32xf32> to vector<8x32xf32>
    %134 = arith.mulf %131, %133 : vector<8x32xf32>
    %c0_59 = arith.constant 0 : index
    %c0_60 = arith.constant 0 : index
    %135 = vector.load %arg8[%c0_59, %c0_60] : memref<1x32xf32, #tpu.memory_space<vmem>>, vector<1x32xf32>
    %136 = vector.broadcast %135 : vector<1x32xf32> to vector<8x32xf32>
    %137 = arith.addf %134, %136 : vector<8x32xf32>
    %c0_61 = arith.constant 0 : index
    %c0_62 = arith.constant 0 : index
    %c0_63 = arith.constant 0 : index
    %138 = vector.load %arg9[%c0_61, %c0_62, %c0_63] : memref<1x8x32xf32, #tpu.memory_space<vmem>>, vector<1x8x32xf32>
    %139 = vector.shape_cast %138 : vector<1x8x32xf32> to vector<8x32xf32>
    %140 = vector.shape_cast %137 : vector<8x32xf32> to vector<1x8x32xf32>
    tpu.vector_store %arg9[%c0_61, %c0_62, %c0_63], %140 {strides = array<i32>} : memref<1x8x32xf32, #tpu.memory_space<vmem>>, vector<1x8x32xf32>,
    return
  }
  func.func @transform_0(%arg0: i32) -> (i32, i32, i32) {
    %c0_i32 = arith.constant 0 : i32
    %c0_i32_0 = arith.constant 0 : i32
    %c0_i32_1 = arith.constant 0 : i32
    return %arg0, %c0_i32, %c0_i32_0 : i32, i32, i32
  }
  func.func @transform_1(%arg0: i32) -> (i32, i32, i32) {
    %c0_i32 = arith.constant 0 : i32
    %c0_i32_0 = arith.constant 0 : i32
    %c0_i32_1 = arith.constant 0 : i32
    return %arg0, %c0_i32, %c0_i32_0 : i32, i32, i32
  }
  func.func @transform_2(%arg0: i32) -> (i32, i32) {
    %c0_i32 = arith.constant 0 : i32
    %c0_i32_0 = arith.constant 0 : i32
    %c0_i32_1 = arith.constant 0 : i32
    return %c0_i32, %c0_i32_0 : i32, i32
  }
  func.func @transform_3(%arg0: i32) -> (i32, i32) {
    %c0_i32 = arith.constant 0 : i32
    %c0_i32_0 = arith.constant 0 : i32
    %c0_i32_1 = arith.constant 0 : i32
    return %c0_i32, %c0_i32_0 : i32, i32
  }
  func.func @transform_4(%arg0: i32) -> (i32, i32) {
    %c0_i32 = arith.constant 0 : i32
    %c0_i32_0 = arith.constant 0 : i32
    %c0_i32_1 = arith.constant 0 : i32
    return %c0_i32, %c0_i32_0 : i32, i32
  }
  func.func @transform_5(%arg0: i32) -> (i32, i32) {
    %c0_i32 = arith.constant 0 : i32
    %c0_i32_0 = arith.constant 0 : i32
    %c0_i32_1 = arith.constant 0 : i32
    return %c0_i32, %c0_i32_0 : i32, i32
  }
  func.func @transform_6(%arg0: i32) -> (i32, i32) {
    %c0_i32 = arith.constant 0 : i32
    %c0_i32_0 = arith.constant 0 : i32
    %c0_i32_1 = arith.constant 0 : i32
    return %c0_i32, %c0_i32_0 : i32, i32
  }
  func.func @transform_7(%arg0: i32) -> (i32, i32) {
    %c0_i32 = arith.constant 0 : i32
    %c0_i32_0 = arith.constant 0 : i32
    %c0_i32_1 = arith.constant 0 : i32
    return %c0_i32, %c0_i32_0 : i32, i32
  }
  func.func @transform_8(%arg0: i32) -> (i32, i32, i32) {
    %c0_i32 = arith.constant 0 : i32
    %c0_i32_0 = arith.constant 0 : i32
    %c0_i32_1 = arith.constant 0 : i32
    return %arg0, %c0_i32, %c0_i32_0 : i32, i32, i32
  }
  func.func @transform_9(%arg0: i32) -> (i32, i32, i32, i32) {
    %c0_i32 = arith.constant 0 : i32
    %c0_i32_0 = arith.constant 0 : i32
    %c0_i32_1 = arith.constant 0 : i32
    %c0_i32_2 = arith.constant 0 : i32
    return %arg0, %c0_i32, %c0_i32_0, %c0_i32_1 : i32, i32, i32, i32
  }
}

</mosaic_0001>

<llo_original>
// kernel: tpu_custom_call.1
$region0: #{tpu_custom_call.1}
  #allocation0 [shape = 'u32[]', space=smem, size = 0x4, offset = 0x4, fixed_abs, tag = 'smem constant byte address 0x4 - core index']
  #allocation1 [shape = 'u32[144,128]{1,0:T(1,128)}', space=vmem, size = 0x12000, scoped, tag = 'internal scratch']
  %s0 = inlined_call_operand.hbm [shape: f32[2,8,32], index: 0, kind: input, shape index: {}]
  %s1 = inlined_call_operand.hbm [shape: f32[2,1,8], index: 1, kind: input, shape index: {}]
  %s2 = inlined_call_operand.hbm [shape: f32[32,96], index: 2, kind: input, shape index: {}]
  %s3 = inlined_call_operand.vmem [shape: f32[1,96], index: 3, kind: input, shape index: {}]
  %s4 = inlined_call_operand.hbm [shape: f32[32,32], index: 4, kind: input, shape index: {}]
  %s5 = inlined_call_operand.vmem [shape: f32[1,32], index: 5, kind: input, shape index: {}]
  %s6 = inlined_call_operand.vmem [shape: f32[1,32], index: 6, kind: input, shape index: {}]
  %s7 = inlined_call_operand.vmem [shape: f32[1,32], index: 7, kind: input, shape index: {}]
  %s8 = inlined_call_operand.hbm [shape: f32[2,8,32], index: 8, kind: output, shape index: {0}]
  %s9 = inlined_call_operand.hbm [shape: f32[2,4,8,8], index: 9, kind: output, shape index: {1}]
  %10 = xla_tuple %s8, %s9
  %s11 = sld [smem:[#allocation0]]
  $region89: #{tpu_custom_call.1} parent=0
    _
  %s13 = ssub.s32 1, %s11
  %s14 = scalar_select 0, %s13, %s11
  $region1: #{tpu_custom_call.1} parent=0
    #allocation2 [shape = 'u8[8192]{0}', space=vmem, size = 0x2000, scoped, tag = 'input window, operand 0']
    #allocation3 [shape = 's32[2]{0}', space=sflag, size = 0x8, scoped, tag = 'scoped memory for tpu_custom_call.1']
    #allocation4 [shape = 's32[2]{0}', space=sflag, size = 0x8, scoped, tag = 'scoped memory for tpu_custom_call.1']
    #allocation5 [shape = 'u8[1024]{0}', space=vmem, size = 0x400, scoped, tag = 'input window, operand 1']
    #allocation6 [shape = 's32[2]{0}', space=sflag, size = 0x8, scoped, tag = 'scoped memory for tpu_custom_call.1']
    #allocation7 [shape = 'u8[16384]{0}', space=vmem, size = 0x4000, scoped, tag = 'input window, operand 2, single buffered']
    #allocation8 [shape = 'u8[16384]{0}', space=vmem, size = 0x4000, scoped, tag = 'input window, operand 4, single buffered']
    #allocation9 [shape = 's32[1]{0}', space=sflag, size = 0x4, scoped, tag = 'scoped memory for tpu_custom_call.1']
    #allocation10 [shape = 'u8[8192]{0}', space=vmem, size = 0x2000, scoped, tag = 'output window, operand 0']
    #allocation11 [shape = 'u8[32768]{0}', space=vmem, size = 0x8000, scoped, tag = 'output window, operand 1']
    #allocation12 [shape = 's32[2]{0}', space=sflag, size = 0x8, scoped, tag = 'scoped memory for tpu_custom_call.1']
    %15 = vsyncpa [#allocation3], 0
    %s16 = scalar_lea.sflag [#allocation3], 1
    %17 = vsyncpa %s16, 0
    %18 = vsyncpa [#allocation6], 0
    %s19 = scalar_lea.sflag [#allocation6], 1
    %20 = vsyncpa %s19, 0
    %21 = vsyncpa [#allocation9], 0
    %22 = vsyncpa [#allocation4], 0
    %s23 = scalar_lea.sflag [#allocation4], 1
    %24 = vsyncpa %s23, 0
    %25 = vsyncpa [#allocation12], 0
    %s26 = scalar_lea.sflag [#allocation12], 1
    %27 = vsyncpa %s26, 0
    loop: start=0, step=1, limit=4
    $region2: #{tpu_custom_call.1} parent=1 // loop_pre_header
      _
    $region3: #{tpu_custom_call.1} parent=1 // loop_header
      %s29 = sphi 0, %s33
      %p30 = scmp.ge.s32.totalorder %s29, 4
      %s39 = sphi 0, %s41
      %s42 = sphi 0, %s39
      %s43 = sphi 0, %s42
      %s59 = sphi 0, %s43
      %s65 = sphi 0, %s67
      %s68 = sphi 0, %s65
      %s69 = sphi 0, %s68
      %s85 = sphi 0, %s69
      %s89 = sphi 0, %s89
      %s91 = sphi 0, %s89
      %s92 = sphi 0, %s91
      %s106 = sphi 0, %s92
      %s110 = sphi 0, %s110
      %s112 = sphi 0, %s110
      %s113 = sphi 0, %s112
      %s127 = sphi 0, %s113
      %s131 = sphi 0, %s131
      %s133 = sphi 0, %s131
      %s134 = sphi 0, %s133
      %s148 = sphi 0, %s134
      %s152 = sphi 0, %s152
      %s154 = sphi 0, %s152
      %s155 = sphi 0, %s154
      %s169 = sphi 0, %s155
      %s173 = sphi 0, %s173
      %s175 = sphi 0, %s173
      %s176 = sphi 0, %s175
      %s190 = sphi 0, %s176
      %s194 = sphi 0, %s194
      %s196 = sphi 0, %s194
      %s197 = sphi 0, %s196
      %s211 = sphi 0, %s197
      %s217 = sphi 0, %s219
      %s220 = sphi 0, %s217
      %s221 = sphi 0, %s220
      %s237 = sphi 0, %s221
      %s243 = sphi 0, %s245
      %s246 = sphi 0, %s243
      %s247 = sphi 0, %s246
      %s263 = sphi 0, %s247
    $region4: #{tpu_custom_call.1} parent=1 // loop_header_branch
      %32 = sbr.rel (%p30) target = $region8
    $region5: #{tpu_custom_call.1} parent=1 // loop_body
      %s34 = ssub.s32 %s29, 1
      %s35 = ssub.s32 %s29, 2
      %s36 = sadd.s32 %s29, 1
      %s37 = ssub.s32 %s29, %s36
      %p38 = scmp.eq.s32.totalorder %s37, 0
      %s40 = sadd.s32 %s39, 1
      %s41 = scalar_select %p38, %s39, %s40
      %p44 = pneg %p38
      %p45 = scmp.eq.s32.totalorder %s29, 1
      %p46 = por %p44, %p45
      %p47 = scmp.ne.s32.totalorder %s39, %s42
      %p48 = scmp.eq.s32.totalorder %s29, 0
      %p49 = por %p47, %p48
      %p50 = scmp.ne.s32.totalorder %s39, %s42
      %p51 = scmp.eq.s32.totalorder %s34, 1
      %p52 = por %p50, %p51
      %p53 = scmp.ne.s32.totalorder %s42, %s43
      %p54 = scmp.eq.s32.totalorder %s34, 0
      %p55 = por %p53, %p54
      %p56 = scmp.ne.s32.totalorder %s42, %s43
      %p57 = scmp.eq.s32.totalorder %s35, 1
      %p58 = por %p56, %p57
      %p60 = scmp.ne.s32.totalorder %s43, %s59
      %p61 = scmp.eq.s32.totalorder %s35, 0
      %p62 = por %p60, %p61
      %s63 = ssub.s32 %s29, %s36
      %p64 = scmp.eq.s32.totalorder %s63, 0
      %s66 = sadd.s32 %s65, 1
      %s67 = scalar_select %p64, %s65, %s66
      %p70 = pneg %p64
      %p71 = scmp.eq.s32.totalorder %s29, 1
      %p72 = por %p70, %p71
      %p73 = scmp.ne.s32.totalorder %s65, %s68
      %p74 = scmp.eq.s32.totalorder %s29, 0
      %p75 = por %p73, %p74
      %p76 = scmp.ne.s32.totalorder %s65, %s68
      %p77 = scmp.eq.s32.totalorder %s34, 1
      %p78 = por %p76, %p77
      %p79 = scmp.ne.s32.totalorder %s68, %s69
      %p80 = scmp.eq.s32.totalorder %s34, 0
      %p81 = por %p79, %p80
      %p82 = scmp.ne.s32.totalorder %s68, %s69
      %p83 = scmp.eq.s32.totalorder %s35, 1
      %p84 = por %p82, %p83
      %p86 = scmp.ne.s32.totalorder %s69, %s85
      %p87 = scmp.eq.s32.totalorder %s35, 0
      %p88 = por %p86, %p87
      %s90 = sadd.s32 %s89, 1
      %p93 = scmp.eq.s32.totalorder %s29, 1
      %p94 = scmp.ne.s32.totalorder %s89, %s91
      %p95 = scmp.eq.s32.totalorder %s29, 0
      %p96 = por %p94, %p95
      %p97 = scmp.ne.s32.totalorder %s89, %s91
      %p98 = scmp.eq.s32.totalorder %s34, 1
      %p99 = por %p97, %p98
      %p100 = scmp.ne.s32.totalorder %s91, %s92
      %p101 = scmp.eq.s32.totalorder %s34, 0
      %p102 = por %p100, %p101
      %p103 = scmp.ne.s32.totalorder %s91, %s92
      %p104 = scmp.eq.s32.totalorder %s35, 1
      %p105 = por %p103, %p104
      %p107 = scmp.ne.s32.totalorder %s92, %s106
      %p108 = scmp.eq.s32.totalorder %s35, 0
      %p109 = por %p107, %p108
      %s111 = sadd.s32 %s110, 1
      %p114 = scmp.eq.s32.totalorder %s29, 1
      %p115 = scmp.ne.s32.totalorder %s110, %s112
      %p116 = scmp.eq.s32.totalorder %s29, 0
      %p117 = por %p115, %p116
      %p118 = scmp.ne.s32.totalorder %s110, %s112
      %p119 = scmp.eq.s32.totalorder %s34, 1
      %p120 = por %p118, %p119
      %p121 = scmp.ne.s32.totalorder %s112, %s113
      %p122 = scmp.eq.s32.totalorder %s34, 0
      %p123 = por %p121, %p122
      %p124 = scmp.ne.s32.totalorder %s112, %s113
      %p125 = scmp.eq.s32.totalorder %s35, 1
      %p126 = por %p124, %p125
      %p128 = scmp.ne.s32.totalorder %s113, %s127
      %p129 = scmp.eq.s32.totalorder %s35, 0
      %p130 = por %p128, %p129
      %s132 = sadd.s32 %s131, 1
      %p135 = scmp.eq.s32.totalorder %s29, 1
      %p136 = scmp.ne.s32.totalorder %s131, %s133
      %p137 = scmp.eq.s32.totalorder %s29, 0
      %p138 = por %p136, %p137
      %p139 = scmp.ne.s32.totalorder %s131, %s133
      %p140 = scmp.eq.s32.totalorder %s34, 1
      %p141 = por %p139, %p140
      %p142 = scmp.ne.s32.totalorder %s133, %s134
      %p143 = scmp.eq.s32.totalorder %s34, 0
      %p144 = por %p142, %p143
      %p145 = scmp.ne.s32.totalorder %s133, %s134
      %p146 = scmp.eq.s32.totalorder %s35, 1
      %p147 = por %p145, %p146
      %p149 = scmp.ne.s32.totalorder %s134, %s148
      %p150 = scmp.eq.s32.totalorder %s35, 0
      %p151 = por %p149, %p150
      %s153 = sadd.s32 %s152, 1
      %p156 = scmp.eq.s32.totalorder %s29, 1
      %p157 = scmp.ne.s32.totalorder %s152, %s154
      %p158 = scmp.eq.s32.totalorder %s29, 0
      %p159 = por %p157, %p158
      %p160 = scmp.ne.s32.totalorder %s152, %s154
      %p161 = scmp.eq.s32.totalorder %s34, 1
      %p162 = por %p160, %p161
      %p163 = scmp.ne.s32.totalorder %s154, %s155
      %p164 = scmp.eq.s32.totalorder %s34, 0
      %p165 = por %p163, %p164
      %p166 = scmp.ne.s32.totalorder %s154, %s155
      %p167 = scmp.eq.s32.totalorder %s35, 1
      %p168 = por %p166, %p167
      %p170 = scmp.ne.s32.totalorder %s155, %s169
      %p171 = scmp.eq.s32.totalorder %s35, 0
      %p172 = por %p170, %p171
      %s174 = sadd.s32 %s173, 1
      %p177 = scmp.eq.s32.totalorder %s29, 1
      %p178 = scmp.ne.s32.totalorder %s173, %s175
      %p179 = scmp.eq.s32.totalorder %s29, 0
      %p180 = por %p178, %p179
      %p181 = scmp.ne.s32.totalorder %s173, %s175
      %p182 = scmp.eq.s32.totalorder %s34, 1
      %p183 = por %p181, %p182
      %p184 = scmp.ne.s32.totalorder %s175, %s176
      %p185 = scmp.eq.s32.totalorder %s34, 0
      %p186 = por %p184, %p185
      %p187 = scmp.ne.s32.totalorder %s175, %s176
      %p188 = scmp.eq.s32.totalorder %s35, 1
      %p189 = por %p187, %p188
      %p191 = scmp.ne.s32.totalorder %s176, %s190
      %p192 = scmp.eq.s32.totalorder %s35, 0
      %p193 = por %p191, %p192
      %s195 = sadd.s32 %s194, 1
      %p198 = scmp.eq.s32.totalorder %s29, 1
      %p199 = scmp.ne.s32.totalorder %s194, %s196
      %p200 = scmp.eq.s32.totalorder %s29, 0
      %p201 = por %p199, %p200
      %p202 = scmp.ne.s32.totalorder %s194, %s196
      %p203 = scmp.eq.s32.totalorder %s34, 1
      %p204 = por %p202, %p203
      %p205 = scmp.ne.s32.totalorder %s196, %s197
      %p206 = scmp.eq.s32.totalorder %s34, 0
      %p207 = por %p205, %p206
      %p208 = scmp.ne.s32.totalorder %s196, %s197
      %p209 = scmp.eq.s32.totalorder %s35, 1
      %p210 = por %p208, %p209
      %p212 = scmp.ne.s32.totalorder %s197, %s211
      %p213 = scmp.eq.s32.totalorder %s35, 0
      %p214 = por %p212, %p213
      %s215 = ssub.s32 %s29, %s36
      %p216 = scmp.eq.s32.totalorder %s215, 0
      %s218 = sadd.s32 %s217, 1
      %s219 = scalar_select %p216, %s217, %s218
      %p222 = pneg %p216
      %p223 = scmp.eq.s32.totalorder %s29, 1
      %p224 = por %p222, %p223
      %p225 = scmp.ne.s32.totalorder %s217, %s220
      %p226 = scmp.eq.s32.totalorder %s29, 0
      %p227 = por %p225, %p226
      %p228 = scmp.ne.s32.totalorder %s217, %s220
      %p229 = scmp.eq.s32.totalorder %s34, 1
      %p230 = por %p228, %p229
      %p231 = scmp.ne.s32.totalorder %s220, %s221
      %p232 = scmp.eq.s32.totalorder %s34, 0
      %p233 = por %p231, %p232
      %p234 = scmp.ne.s32.totalorder %s220, %s221
      %p235 = scmp.eq.s32.totalorder %s35, 1
      %p236 = por %p234, %p235
      %p238 = scmp.ne.s32.totalorder %s221, %s237
      %p239 = scmp.eq.s32.totalorder %s35, 0
      %p240 = por %p238, %p239
      %s241 = ssub.s32 %s29, %s36
      %p242 = scmp.eq.s32.totalorder %s241, 0
      %s244 = sadd.s32 %s243, 1
      %s245 = scalar_select %p242, %s243, %s244
      %p248 = pneg %p242
      %p249 = scmp.eq.s32.totalorder %s29, 1
      %p250 = por %p248, %p249
      %p251 = scmp.ne.s32.totalorder %s243, %s246
      %p252 = scmp.eq.s32.totalorder %s29, 0
      %p253 = por %p251, %p252
      %p254 = scmp.ne.s32.totalorder %s243, %s246
      %p255 = scmp.eq.s32.totalorder %s34, 1
      %p256 = por %p254, %p255
      %p257 = scmp.ne.s32.totalorder %s246, %s247
      %p258 = scmp.eq.s32.totalorder %s34, 0
      %p259 = por %p257, %p258
      %p260 = scmp.ne.s32.totalorder %s246, %s247
      %p261 = scmp.eq.s32.totalorder %s35, 1
      %p262 = por %p260, %p261
      %p264 = scmp.ne.s32.totalorder %s247, %s263
      %p265 = scmp.eq.s32.totalorder %s35, 0
      %p266 = por %p264, %p265
      %p267 = scmp.le.s32.totalorder 1, %s29
      %p268 = scmp.lt.s32.totalorder %s29, 3
      %p269 = pnand %p267, %p268
      %p270 = pneg %p269
      // Predicated region
      $region9: #{tpu_custom_call.1} parent=5 // pred_check
        _
      $region10: #{tpu_custom_call.1} parent=5 // pred_check_branch
        %272 = sbr.rel (%p269) target = $region12
      $region11: #{tpu_custom_call.1} parent=5 // pred_region
        %s273 = ssub.s32 %s29, 1
        // Predicated region
        $region13: #{tpu_custom_call.1} parent=11 // pred_check
          %p274 = pneg %p102
        $region14: #{tpu_custom_call.1} parent=11 // pred_check_branch
          %276 = sbr.rel (%p274) target = $region16
        $region15: #{tpu_custom_call.1} parent=11 // pred_region
          %s278 = ssub.s32 512, 512
          %279 = vsyncadd [#allocation6], %s278
          %s280 = sshll.u32 [#allocation7], 4
          %s281 = int_to_ptr.vmem [resolvable:$true] %s280
          %286 = dma.hbm_to_vmem [thread:$0]  %s2, 512, %s281, [#allocation6], 128, 128, 8
        $region16: #{tpu_custom_call.1} parent=11 // pred_fallthru
          _
        // Predicated region
        $region17: #{tpu_custom_call.1} parent=11 // pred_check
          %p287 = pneg %p123
        $region18: #{tpu_custom_call.1} parent=11 // pred_check_branch
          %289 = sbr.rel (%p287) target = $region20
        $region19: #{tpu_custom_call.1} parent=11 // pred_region
          _
        $region20: #{tpu_custom_call.1} parent=11 // pred_fallthru
          _
        // Predicated region
        $region21: #{tpu_custom_call.1} parent=11 // pred_check
          %p290 = pneg %p144
        $region22: #{tpu_custom_call.1} parent=11 // pred_check_branch
          %292 = sbr.rel (%p290) target = $region24
        $region23: #{tpu_custom_call.1} parent=11 // pred_region
          %s294 = ssub.s32 512, 512
          %295 = vsyncadd [#allocation9], %s294
          %s296 = sshll.u32 [#allocation8], 4
          %s297 = int_to_ptr.vmem [resolvable:$true] %s296
          %302 = dma.hbm_to_vmem [thread:$0]  %s4, 512, %s297, [#allocation9], 128, 128, 8
        $region24: #{tpu_custom_call.1} parent=11 // pred_fallthru
          _
        // Predicated region
        $region25: #{tpu_custom_call.1} parent=11 // pred_check
          %p303 = pneg %p165
        $region26: #{tpu_custom_call.1} parent=11 // pred_check_branch
          %305 = sbr.rel (%p303) target = $region28
        $region27: #{tpu_custom_call.1} parent=11 // pred_region
          _
        $region28: #{tpu_custom_call.1} parent=11 // pred_fallthru
          _
        // Predicated region
        $region29: #{tpu_custom_call.1} parent=11 // pred_check
          %p306 = pneg %p186
        $region30: #{tpu_custom_call.1} parent=11 // pred_check_branch
          %308 = sbr.rel (%p306) target = $region32
        $region31: #{tpu_custom_call.1} parent=11 // pred_region
          _
        $region32: #{tpu_custom_call.1} parent=11 // pred_fallthru
          _
        // Predicated region
        $region33: #{tpu_custom_call.1} parent=11 // pred_check
          %p309 = pneg %p207
        $region34: #{tpu_custom_call.1} parent=11 // pred_check_branch
          %311 = sbr.rel (%p309) target = $region36
        $region35: #{tpu_custom_call.1} parent=11 // pred_region
          _
        $region36: #{tpu_custom_call.1} parent=11 // pred_fallthru
          _
      $region12: #{tpu_custom_call.1} parent=5 // pred_fallthru
        _
      %p312 = scmp.lt.s32.totalorder %s29, 2
      // Predicated region
      $region37: #{tpu_custom_call.1} parent=5 // pred_check
        %p313 = pneg %p312
      $region38: #{tpu_custom_call.1} parent=5 // pred_check_branch
        %315 = sbr.rel (%p313) target = $region40
      $region39: #{tpu_custom_call.1} parent=5 // pred_region
        // Predicated region
        $region41: #{tpu_custom_call.1} parent=39 // pred_check
          %p316 = pneg %p49
        $region42: #{tpu_custom_call.1} parent=39 // pred_check_branch
          %318 = sbr.rel (%p316) target = $region44
        $region43: #{tpu_custom_call.1} parent=39 // pred_region
          %s319 = sand.u32 %s39, 1
          %s320 = scalar_lea.sflag [#allocation3], %s319
          %s321 = sand.u32 %s39, 1
          %s322 = smul.addr %s321, 8
          %s323 = scalar_lea.vmem [#allocation2], %s322
          %s325 = ssub.s32 128, 128
          %326 = vsyncadd %s320, %s325
          %s327 = smul.addr %s29, 128
          %s328 = scalar_lea.hbm %s0, %s327
          %s330 = sshll.u32 %s323, 4
          %s331 = int_to_ptr.vmem [resolvable:$true] %s330
          %333 = dma.hbm_to_vmem [thread:$0]  %s328, 128, %s331, %s320
        $region44: #{tpu_custom_call.1} parent=39 // pred_fallthru
          _
        // Predicated region
        $region45: #{tpu_custom_call.1} parent=39 // pred_check
          %p334 = pneg %p75
        $region46: #{tpu_custom_call.1} parent=39 // pred_check_branch
          %336 = sbr.rel (%p334) target = $region48
        $region47: #{tpu_custom_call.1} parent=39 // pred_region
          %s337 = sand.u32 %s29, 1
          %s338 = scalar_lea.sflag [#allocation6], %s337
          %s339 = sand.u32 %s65, 1
          %s340 = scalar_lea.vmem [#allocation5], %s339
          %s342 = ssub.s32 16, 16
          %343 = vsyncadd %s338, %s342
          %s344 = smul.addr %s29, 16
          %s345 = scalar_lea.hbm %s1, %s344
          %s347 = sshll.u32 %s340, 4
          %s348 = int_to_ptr.vmem [resolvable:$true] %s347
          %350 = dma.hbm_to_vmem [thread:$0]  %s345, 16, %s348, %s338
        $region48: #{tpu_custom_call.1} parent=39 // pred_fallthru
          _
      $region40: #{tpu_custom_call.1} parent=5 // pred_fallthru
        _
      %p351 = scmp.le.s32.totalorder 1, %s29
      %p352 = scmp.lt.s32.totalorder %s29, 3
      %p353 = pnand %p351, %p352
      %p354 = pneg %p353
      // Predicated region
      $region49: #{tpu_custom_call.1} parent=5 // pred_check
        _
      $region50: #{tpu_custom_call.1} parent=5 // pred_check_branch
        %356 = sbr.rel (%p353) target = $region52
      $region51: #{tpu_custom_call.1} parent=5 // pred_region
        %s357 = ssub.s32 %s29, 1
        %s358 = sand.u32 %s42, 1
        %s359 = scalar_lea.sflag [#allocation3], %s358
        %s360 = sand.u32 %s42, 1
        %s361 = smul.addr %s360, 8
        %s362 = scalar_lea.vmem [#allocation2], %s361
        // Predicated region
        $region53: #{tpu_custom_call.1} parent=51 // pred_check
          %p363 = pneg %p55
        $region54: #{tpu_custom_call.1} parent=51 // pred_check_branch
          %365 = sbr.rel (%p363) target = $region56
        $region55: #{tpu_custom_call.1} parent=51 // pred_region
          %366 = dma.done %s359, 128
        $region56: #{tpu_custom_call.1} parent=51 // pred_fallthru
          _
        %s367 = sand.u32 %s34, 1
        %s368 = scalar_lea.sflag [#allocation6], %s367
        %s369 = sand.u32 %s68, 1
        %s370 = scalar_lea.vmem [#allocation5], %s369
        // Predicated region
        $region57: #{tpu_custom_call.1} parent=51 // pred_check
          %p371 = pneg %p81
        $region58: #{tpu_custom_call.1} parent=51 // pred_check_branch
          %373 = sbr.rel (%p371) target = $region60
        $region59: #{tpu_custom_call.1} parent=51 // pred_region
          %374 = dma.done %s368, 16
        $region60: #{tpu_custom_call.1} parent=51 // pred_fallthru
          _
        // Predicated region
        $region61: #{tpu_custom_call.1} parent=51 // pred_check
          %p375 = pneg %p102
        $region62: #{tpu_custom_call.1} parent=51 // pred_check_branch
          %377 = sbr.rel (%p375) target = $region64
        $region63: #{tpu_custom_call.1} parent=51 // pred_region
          %378 = dma.done [#allocation6], 512
        $region64: #{tpu_custom_call.1} parent=51 // pred_fallthru
          _
        // Predicated region
        $region65: #{tpu_custom_call.1} parent=51 // pred_check
          %p379 = pneg %p144
        $region66: #{tpu_custom_call.1} parent=51 // pred_check_branch
          %381 = sbr.rel (%p379) target = $region68
        $region67: #{tpu_custom_call.1} parent=51 // pred_region
          %382 = dma.done [#allocation9], 512
        $region68: #{tpu_custom_call.1} parent=51 // pred_fallthru
          _
        %s383 = sand.u32 %s42, 1
        %s384 = scalar_lea.sflag [#allocation3], %s383
        %s385 = sand.u32 %s42, 1
        %s386 = smul.addr %s385, 8
        %s387 = scalar_lea.vmem [#allocation2], %s386
        %p388 = pneg %p55
        %p389 = pneg %p52
        %s390 = sand.u32 %s34, 1
        %s391 = scalar_lea.sflag [#allocation6], %s390
        %s392 = sand.u32 %s68, 1
        %s393 = scalar_lea.vmem [#allocation5], %s392
        %p394 = pneg %p81
        %p395 = pneg %p78
        %p396 = pneg %p102
        %p397 = pneg %p99
        %p398 = pneg %p123
        %p399 = pneg %p120
        %p400 = pneg %p144
        %p401 = pneg %p141
        %p402 = pneg %p165
        %p403 = pneg %p162
        %p404 = pneg %p186
        %p405 = pneg %p183
        %p406 = pneg %p207
        %p407 = pneg %p204
        %p408 = pneg %p233
        %p409 = pneg %p230
        %s410 = sand.u32 %s220, 1
        %s411 = scalar_lea.sflag [#allocation4], %s410
        %s412 = sand.u32 %s220, 1
        %s413 = smul.addr %s412, 8
        %s414 = scalar_lea.vmem [#allocation10], %s413
        %p415 = pneg %p259
        %p416 = pneg %p256
        %s417 = sand.u32 %s246, 1
        %s418 = scalar_lea.sflag [#allocation12], %s417
        %s419 = sand.u32 %s246, 1
        %s420 = smul.addr %s419, 32
        %s421 = scalar_lea.vmem [#allocation11], %s420
        %v422 = vld [vmem:[%s362] sm:$0xff]
        %v423 = vld [vmem:[%s370] sm:$0x1]
        %v424 = vld [vmem:[#allocation7] sm:$0xff]
        %v425 = vld [vmem:[#allocation7 + $0x8] sm:$0xff]
        %v426 = vld [vmem:[#allocation7 + $0x10] sm:$0xff]
        %v427 = vld [vmem:[#allocation7 + $0x18] sm:$0xff]
        %v428 = vld [vmem:[%s3] sm:$0x1]
        %v430 = vlaneseq
        %v431 = vshrl.u32 %v430, 7
        %v432 = vsub.s32 0, %v431
        %v433 = vrot.slane %v428, %v432
        %vm435 = vcmask 261120
        %v437 = vsel %vm435, %v422, 0
        %439 = vmatprep.subr.mxu0 0.0
        %440 = vmatpush1.msra.mxu0 0.0
        %441 = vmatprep.subr.mxu0 0.0
        %442 = vmatpush1.msra.mxu0 0.0
        %443 = vmatprep.subr.mxu0 0.0
        %444 = vmatpush1.msra.mxu0 0.0
        %445 = vmatprep.subr.mxu0 0.0
        %446 = vmatpush1.msra.mxu0 0.0
        %447 = vmatprep.subr.mxu0 0.0
        %448 = vmatpush1.msra.mxu0 0.0
        %449 = vmatprep.subr.mxu0 0.0
        %450 = vmatpush1.msra.mxu0 0.0
        %451 = vmatprep.subr.mxu0 0.0
        %452 = vmatpush1.msra.mxu0 0.0
        %453 = vmatprep.subr.mxu0 0.0
        %454 = vmatpush1.msra.mxu0 0.0
        %455 = vmatprep.subr.mxu0 0.0
        %456 = vmatpush1.msra.mxu0 0.0
        %457 = vmatprep.subr.mxu0 0.0
        %458 = vmatpush1.msra.mxu0 0.0
        %459 = vmatprep.subr.mxu0 0.0
        %460 = vmatpush1.msra.mxu0 0.0
        %461 = vmatprep.subr.mxu0 0.0
        %462 = vmatpush1.msra.mxu0 0.0
        %463 = vmatprep.subr.mxu0 0.0
        %464 = vmatpush1.msra.mxu0 %v427
        %465 = vmatprep.subr.mxu0 0.0
        %466 = vmatpush1.msra.mxu0 %v426
        %467 = vmatprep.subr.mxu0 0.0
        %468 = vmatpush1.msra.mxu0 %v425
        %469 = vmatprep.subr.mxu0 0.0
        %470 = vmatpush1.msra.mxu0 %v424
        %471 = vmatprep.subr.mxu0 0.0
        %472 = vmatpush2.msra.mxu0 0.0
        %473 = vmatprep.subr.mxu0 0.0
        %474 = vmatpush2.msra.mxu0 0.0
        %475 = vmatprep.subr.mxu0 0.0
        %476 = vmatpush2.msra.mxu0 0.0
        %477 = vmatprep.subr.mxu0 0.0
        %478 = vmatpush2.msra.mxu0 0.0
        %479 = vmatprep.subr.mxu0 0.0
        %480 = vmatpush2.msra.mxu0 0.0
        %481 = vmatprep.subr.mxu0 0.0
        %482 = vmatpush2.msra.mxu0 0.0
        %483 = vmatprep.subr.mxu0 0.0
        %484 = vmatpush2.msra.mxu0 0.0
        %485 = vmatprep.subr.mxu0 0.0
        %486 = vmatpush2.msra.mxu0 0.0
        %487 = vmatprep.subr.mxu0 0.0
        %488 = vmatpush2.msra.mxu0 0.0
        %489 = vmatprep.subr.mxu0 0.0
        %490 = vmatpush2.msra.mxu0 0.0
        %491 = vmatprep.subr.mxu0 0.0
        %492 = vmatpush2.msra.mxu0 0.0
        %493 = vmatprep.subr.mxu0 0.0
        %494 = vmatpush2.msra.mxu0 0.0
        %495 = vmatprep.subr.mxu0 0.0
        %496 = vmatpush2.msra.mxu0 0.0
        %497 = vmatprep.subr.mxu0 0.0
        %498 = vmatpush2.msra.mxu0 0.0
        %499 = vmatprep.subr.mxu0 0.0
        %500 = vmatpush2.msra.mxu0 0.0
        %501 = vmatprep.subr.mxu0 0.0
        %502 = vmatpush2.msra.mxu0 0.0
        %503 = vmatprep.mubr.f32.mxu0 0.0
        %504 = vmatmul.mubr.f32.gmra.mxu0 %v437
        %v505 = vpop.f32.mrf.mxu0
        %v506 = vadd.f32 %v433, %v505
        %v507 = vpop.f32.mrf.mxu0
        %508 = vdwg.mxu0
        %vm509 = vcmp.eq.f32.partialorder %v423, 0.0
        %v510 = vmul.f32 %v506, 0.35355338
        %512 = vrot.lane.b32.xlu0 %v506, 96
        %v513 = vpop.permute.xlu0 %512
        %vm514 = vcmask 64512
        %v516 = vsel %vm514, %v510, 0
        %v518 = vsel %vm514, %v513, 0
        %520 = vmatprep.subr.mxu0 0.0
        %521 = vmatpush1.xpose.msra.mxu0 0.0
        %522 = vmatprep.subr.mxu0 0.0
        %523 = vmatpush1.xpose.msra.mxu0 0.0
        %524 = vmatprep.subr.mxu0 0.0
        %525 = vmatpush1.xpose.msra.mxu0 0.0
        %526 = vmatprep.subr.mxu0 0.0
        %527 = vmatpush1.xpose.msra.mxu0 0.0
        %528 = vmatprep.subr.mxu0 0.0
        %529 = vmatpush1.xpose.msra.mxu0 0.0
        %530 = vmatprep.subr.mxu0 0.0
        %531 = vmatpush1.xpose.msra.mxu0 0.0
        %532 = vmatprep.subr.mxu0 0.0
        %533 = vmatpush1.xpose.msra.mxu0 0.0
        %534 = vmatprep.subr.mxu0 0.0
        %535 = vmatpush1.xpose.msra.mxu0 0.0
        %536 = vmatprep.subr.mxu0 0.0
        %537 = vmatpush1.xpose.msra.mxu0 0.0
        %538 = vmatprep.subr.mxu0 0.0
        %539 = vmatpush1.xpose.msra.mxu0 0.0
        %540 = vmatprep.subr.mxu0 0.0
        %541 = vmatpush1.xpose.msra.mxu0 0.0
        %542 = vmatprep.subr.mxu0 0.0
        %543 = vmatpush1.xpose.msra.mxu0 0.0
        %544 = vmatprep.subr.mxu0 0.0
        %545 = vmatpush1.xpose.msra.mxu0 0.0
        %546 = vmatprep.subr.mxu0 0.0
        %547 = vmatpush1.xpose.msra.mxu0 0.0
        %548 = vmatprep.subr.mxu0 0.0
        %549 = vmatpush1.xpose.msra.mxu0 0.0
        %550 = vmatprep.subr.mxu0 0.0
        %551 = vmatpush1.xpose.msra.mxu0 %v518
        %552 = vmatprep.subr.mxu0 0.0
        %553 = vmatpush2.xpose.msra.mxu0 0.0
        %554 = vmatprep.subr.mxu0 0.0
        %555 = vmatpush2.xpose.msra.mxu0 0.0
        %556 = vmatprep.subr.mxu0 0.0
        %557 = vmatpush2.xpose.msra.mxu0 0.0
        %558 = vmatprep.subr.mxu0 0.0
        %559 = vmatpush2.xpose.msra.mxu0 0.0
        %560 = vmatprep.subr.mxu0 0.0
        %561 = vmatpush2.xpose.msra.mxu0 0.0
        %562 = vmatprep.subr.mxu0 0.0
        %563 = vmatpush2.xpose.msra.mxu0 0.0
        %564 = vmatprep.subr.mxu0 0.0
        %565 = vmatpush2.xpose.msra.mxu0 0.0
        %566 = vmatprep.subr.mxu0 0.0
        %567 = vmatpush2.xpose.msra.mxu0 0.0
        %568 = vmatprep.subr.mxu0 0.0
        %569 = vmatpush2.xpose.msra.mxu0 0.0
        %570 = vmatprep.subr.mxu0 0.0
        %571 = vmatpush2.xpose.msra.mxu0 0.0
        %572 = vmatprep.subr.mxu0 0.0
        %573 = vmatpush2.xpose.msra.mxu0 0.0
        %574 = vmatprep.subr.mxu0 0.0
        %575 = vmatpush2.xpose.msra.mxu0 0.0
        %576 = vmatprep.subr.mxu0 0.0
        %577 = vmatpush2.xpose.msra.mxu0 0.0
        %578 = vmatprep.subr.mxu0 0.0
        %579 = vmatpush2.xpose.msra.mxu0 0.0
        %580 = vmatprep.subr.mxu0 0.0
        %581 = vmatpush2.xpose.msra.mxu0 0.0
        %582 = vmatprep.subr.mxu0 0.0
        %583 = vmatpush2.xpose.msra.mxu0 0.0
        %584 = vmatprep.mubr.f32.mxu0 0.0
        %585 = vmatmul.mubr.f32.gmra.mxu0 %v516
        %v586 = vpop.f32.mrf.mxu0
        %v587 = vadd.f32 0.0, %v586
        %v588 = vpop.f32.mrf.mxu0
        %589 = vdwg.mxu0
        %v590 = vsel %vm509, 1, 0
        %v591 = vlaneseq
        %v592 = vshrl.u32 %v591, 7
        %v593 = vsub.s32 0, %v592
        %v594 = vrot.slane %v590, %v593
        %vm595 = vcmp.eq.s32.totalorder %v594, 1
        %v596 = vsel %vm595, -1e+09, %v587
        %v597 = vsel %vm514, %v596, -inf
        %598 = vmax.xlane.f32.xlu0 %v597
        %v599 = vpop.xlane.xlu0 %598
        %v600 = vsub.f32 %v596, %v599
        %v601 = vmul.f32 %v600, 1.442695
        %v602 = vpow.pop %v601
        %v603 = vsel %vm514, %v602, 0.0
        %604 = vadd.xlane.f32.xlu0 %v603
        %v605 = vpop.xlane.xlu0 %604
        %v606 = vrcp.pop %v605
        %v607 = vmul.f32 %v602, %v606
        %608 = vst.msk [vmem:[%s421] sm:$0xff] %vm514, %v607
        %609 = vrot.lane.b32.xlu0 %v506, 64
        %v610 = vpop.permute.xlu0 %609
        %v613 = vsel %vm514, %v607, 0
        %615 = vmatprep.subr.mxu0 0.0
        %616 = vmatpush1.msra.mxu0 0.0
        %617 = vmatprep.subr.mxu0 0.0
        %618 = vmatpush1.msra.mxu0 0.0
        %619 = vmatprep.subr.mxu0 0.0
        %620 = vmatpush1.msra.mxu0 0.0
        %621 = vmatprep.subr.mxu0 0.0
        %622 = vmatpush1.msra.mxu0 0.0
        %623 = vmatprep.subr.mxu0 0.0
        %624 = vmatpush1.msra.mxu0 0.0
        %625 = vmatprep.subr.mxu0 0.0
        %626 = vmatpush1.msra.mxu0 0.0
        %627 = vmatprep.subr.mxu0 0.0
        %628 = vmatpush1.msra.mxu0 0.0
        %629 = vmatprep.subr.mxu0 0.0
        %630 = vmatpush1.msra.mxu0 0.0
        %631 = vmatprep.subr.mxu0 0.0
        %632 = vmatpush1.msra.mxu0 0.0
        %633 = vmatprep.subr.mxu0 0.0
        %634 = vmatpush1.msra.mxu0 0.0
        %635 = vmatprep.subr.mxu0 0.0
        %636 = vmatpush1.msra.mxu0 0.0
        %637 = vmatprep.subr.mxu0 0.0
        %638 = vmatpush1.msra.mxu0 0.0
        %639 = vmatprep.subr.mxu0 0.0
        %640 = vmatpush1.msra.mxu0 0.0
        %641 = vmatprep.subr.mxu0 0.0
        %642 = vmatpush1.msra.mxu0 0.0
        %643 = vmatprep.subr.mxu0 0.0
        %644 = vmatpush1.msra.mxu0 0.0
        %645 = vmatprep.subr.mxu0 0.0
        %646 = vmatpush1.msra.mxu0 %v610
        %647 = vmatprep.subr.mxu0 0.0
        %648 = vmatpush2.msra.mxu0 0.0
        %649 = vmatprep.subr.mxu0 0.0
        %650 = vmatpush2.msra.mxu0 0.0
        %651 = vmatprep.subr.mxu0 0.0
        %652 = vmatpush2.msra.mxu0 0.0
        %653 = vmatprep.subr.mxu0 0.0
        %654 = vmatpush2.msra.mxu0 0.0
        %655 = vmatprep.subr.mxu0 0.0
        %656 = vmatpush2.msra.mxu0 0.0
        %657 = vmatprep.subr.mxu0 0.0
        %658 = vmatpush2.msra.mxu0 0.0
        %659 = vmatprep.subr.mxu0 0.0
        %660 = vmatpush2.msra.mxu0 0.0
        %661 = vmatprep.subr.mxu0 0.0
        %662 = vmatpush2.msra.mxu0 0.0
        %663 = vmatprep.subr.mxu0 0.0
        %664 = vmatpush2.msra.mxu0 0.0
        %665 = vmatprep.subr.mxu0 0.0
        %666 = vmatpush2.msra.mxu0 0.0
        %667 = vmatprep.subr.mxu0 0.0
        %668 = vmatpush2.msra.mxu0 0.0
        %669 = vmatprep.subr.mxu0 0.0
        %670 = vmatpush2.msra.mxu0 0.0
        %671 = vmatprep.subr.mxu0 0.0
        %672 = vmatpush2.msra.mxu0 0.0
        %673 = vmatprep.subr.mxu0 0.0
        %674 = vmatpush2.msra.mxu0 0.0
        %675 = vmatprep.subr.mxu0 0.0
        %676 = vmatpush2.msra.mxu0 0.0
        %677 = vmatprep.subr.mxu0 0.0
        %678 = vmatpush2.msra.mxu0 0.0
        %679 = vmatprep.mubr.f32.mxu0 0.0
        %680 = vmatmul.mubr.f32.gmra.mxu0 %v613
        %v681 = vpop.f32.mrf.mxu0
        %v682 = vadd.f32 0.0, %v681
        %v683 = vpop.f32.mrf.mxu0
        %684 = vdwg.mxu0
        %685 = vrot.lane.b32.xlu0 %v510, 120
        %v686 = vpop.permute.xlu0 %685
        %687 = vrot.lane.b32.xlu0 %v506, 88
        %v688 = vpop.permute.xlu0 %687
        %v689 = vsel %vm514, %v686, 0
        %v691 = vsel %vm514, %v688, 0
        %693 = vmatprep.subr.mxu0 0.0
        %694 = vmatpush1.xpose.msra.mxu0 0.0
        %695 = vmatprep.subr.mxu0 0.0
        %696 = vmatpush1.xpose.msra.mxu0 0.0
        %697 = vmatprep.subr.mxu0 0.0
        %698 = vmatpush1.xpose.msra.mxu0 0.0
        %699 = vmatprep.subr.mxu0 0.0
        %700 = vmatpush1.xpose.msra.mxu0 0.0
        %701 = vmatprep.subr.mxu0 0.0
        %702 = vmatpush1.xpose.msra.mxu0 0.0
        %703 = vmatprep.subr.mxu0 0.0
        %704 = vmatpush1.xpose.msra.mxu0 0.0
        %705 = vmatprep.subr.mxu0 0.0
        %706 = vmatpush1.xpose.msra.mxu0 0.0
        %707 = vmatprep.subr.mxu0 0.0
        %708 = vmatpush1.xpose.msra.mxu0 0.0
        %709 = vmatprep.subr.mxu0 0.0
        %710 = vmatpush1.xpose.msra.mxu0 0.0
        %711 = vmatprep.subr.mxu0 0.0
        %712 = vmatpush1.xpose.msra.mxu0 0.0
        %713 = vmatprep.subr.mxu0 0.0
        %714 = vmatpush1.xpose.msra.mxu0 0.0
        %715 = vmatprep.subr.mxu0 0.0
        %716 = vmatpush1.xpose.msra.mxu0 0.0
        %717 = vmatprep.subr.mxu0 0.0
        %718 = vmatpush1.xpose.msra.mxu0 0.0
        %719 = vmatprep.subr.mxu0 0.0
        %720 = vmatpush1.xpose.msra.mxu0 0.0
        %721 = vmatprep.subr.mxu0 0.0
        %722 = vmatpush1.xpose.msra.mxu0 0.0
        %723 = vmatprep.subr.mxu0 0.0
        %724 = vmatpush1.xpose.msra.mxu0 %v691
        %725 = vmatprep.subr.mxu0 0.0
        %726 = vmatpush2.xpose.msra.mxu0 0.0
        %727 = vmatprep.subr.mxu0 0.0
        %728 = vmatpush2.xpose.msra.mxu0 0.0
        %729 = vmatprep.subr.mxu0 0.0
        %730 = vmatpush2.xpose.msra.mxu0 0.0
        %731 = vmatprep.subr.mxu0 0.0
        %732 = vmatpush2.xpose.msra.mxu0 0.0
        %733 = vmatprep.subr.mxu0 0.0
        %734 = vmatpush2.xpose.msra.mxu0 0.0
        %735 = vmatprep.subr.mxu0 0.0
        %736 = vmatpush2.xpose.msra.mxu0 0.0
        %737 = vmatprep.subr.mxu0 0.0
        %738 = vmatpush2.xpose.msra.mxu0 0.0
        %739 = vmatprep.subr.mxu0 0.0
        %740 = vmatpush2.xpose.msra.mxu0 0.0
        %741 = vmatprep.subr.mxu0 0.0
        %742 = vmatpush2.xpose.msra.mxu0 0.0
        %743 = vmatprep.subr.mxu0 0.0
        %744 = vmatpush2.xpose.msra.mxu0 0.0
        %745 = vmatprep.subr.mxu0 0.0
        %746 = vmatpush2.xpose.msra.mxu0 0.0
        %747 = vmatprep.subr.mxu0 0.0
        %748 = vmatpush2.xpose.msra.mxu0 0.0
        %749 = vmatprep.subr.mxu0 0.0
        %750 = vmatpush2.xpose.msra.mxu0 0.0
        %751 = vmatprep.subr.mxu0 0.0
        %752 = vmatpush2.xpose.msra.mxu0 0.0
        %753 = vmatprep.subr.mxu0 0.0
        %754 = vmatpush2.xpose.msra.mxu0 0.0
        %755 = vmatprep.subr.mxu0 0.0
        %756 = vmatpush2.xpose.msra.mxu0 0.0
        %757 = vmatprep.mubr.f32.mxu0 0.0
        %758 = vmatmul.mubr.f32.gmra.mxu0 %v689
        %v759 = vpop.f32.mrf.mxu0
        %v760 = vadd.f32 0.0, %v759
        %v761 = vpop.f32.mrf.mxu0
        %762 = vdwg.mxu0
        %v763 = vsel %vm595, -1e+09, %v760
        %v764 = vsel %vm514, %v763, -inf
        %765 = vmax.xlane.f32.xlu0 %v764
        %v766 = vpop.xlane.xlu0 %765
        %v767 = vsub.f32 %v763, %v766
        %v768 = vmul.f32 %v767, 1.442695
        %v769 = vpow.pop %v768
        %v770 = vsel %vm514, %v769, 0.0
        %771 = vadd.xlane.f32.xlu0 %v770
        %v772 = vpop.xlane.xlu0 %771
        %v773 = vrcp.pop %v772
        %v774 = vmul.f32 %v769, %v773
        %s775 = scalar_lea.vmem %s421, 8 [#allocation11]
        %776 = vst.msk [vmem:[%s775] sm:$0xff] %vm514, %v774
        %777 = vrot.lane.b32.xlu0 %v506, 56
        %v778 = vpop.permute.xlu0 %777
        %v781 = vsel %vm514, %v774, 0
        %783 = vmatprep.subr.mxu0 0.0
        %784 = vmatpush1.msra.mxu0 0.0
        %785 = vmatprep.subr.mxu0 0.0
        %786 = vmatpush1.msra.mxu0 0.0
        %787 = vmatprep.subr.mxu0 0.0
        %788 = vmatpush1.msra.mxu0 0.0
        %789 = vmatprep.subr.mxu0 0.0
        %790 = vmatpush1.msra.mxu0 0.0
        %791 = vmatprep.subr.mxu0 0.0
        %792 = vmatpush1.msra.mxu0 0.0
        %793 = vmatprep.subr.mxu0 0.0
        %794 = vmatpush1.msra.mxu0 0.0
        %795 = vmatprep.subr.mxu0 0.0
        %796 = vmatpush1.msra.mxu0 0.0
        %797 = vmatprep.subr.mxu0 0.0
        %798 = vmatpush1.msra.mxu0 0.0
        %799 = vmatprep.subr.mxu0 0.0
        %800 = vmatpush1.msra.mxu0 0.0
        %801 = vmatprep.subr.mxu0 0.0
        %802 = vmatpush1.msra.mxu0 0.0
        %803 = vmatprep.subr.mxu0 0.0
        %804 = vmatpush1.msra.mxu0 0.0
        %805 = vmatprep.subr.mxu0 0.0
        %806 = vmatpush1.msra.mxu0 0.0
        %807 = vmatprep.subr.mxu0 0.0
        %808 = vmatpush1.msra.mxu0 0.0
        %809 = vmatprep.subr.mxu0 0.0
        %810 = vmatpush1.msra.mxu0 0.0
        %811 = vmatprep.subr.mxu0 0.0
        %812 = vmatpush1.msra.mxu0 0.0
        %813 = vmatprep.subr.mxu0 0.0
        %814 = vmatpush1.msra.mxu0 %v778
        %815 = vmatprep.subr.mxu0 0.0
        %816 = vmatpush2.msra.mxu0 0.0
        %817 = vmatprep.subr.mxu0 0.0
        %818 = vmatpush2.msra.mxu0 0.0
        %819 = vmatprep.subr.mxu0 0.0
        %820 = vmatpush2.msra.mxu0 0.0
        %821 = vmatprep.subr.mxu0 0.0
        %822 = vmatpush2.msra.mxu0 0.0
        %823 = vmatprep.subr.mxu0 0.0
        %824 = vmatpush2.msra.mxu0 0.0
        %825 = vmatprep.subr.mxu0 0.0
        %826 = vmatpush2.msra.mxu0 0.0
        %827 = vmatprep.subr.mxu0 0.0
        %828 = vmatpush2.msra.mxu0 0.0
        %829 = vmatprep.subr.mxu0 0.0
        %830 = vmatpush2.msra.mxu0 0.0
        %831 = vmatprep.subr.mxu0 0.0
        %832 = vmatpush2.msra.mxu0 0.0
        %833 = vmatprep.subr.mxu0 0.0
        %834 = vmatpush2.msra.mxu0 0.0
        %835 = vmatprep.subr.mxu0 0.0
        %836 = vmatpush2.msra.mxu0 0.0
        %837 = vmatprep.subr.mxu0 0.0
        %838 = vmatpush2.msra.mxu0 0.0
        %839 = vmatprep.subr.mxu0 0.0
        %840 = vmatpush2.msra.mxu0 0.0
        %841 = vmatprep.subr.mxu0 0.0
        %842 = vmatpush2.msra.mxu0 0.0
        %843 = vmatprep.subr.mxu0 0.0
        %844 = vmatpush2.msra.mxu0 0.0
        %845 = vmatprep.subr.mxu0 0.0
        %846 = vmatpush2.msra.mxu0 0.0
        %847 = vmatprep.mubr.f32.mxu0 0.0
        %848 = vmatmul.mubr.f32.gmra.mxu0 %v781
        %v849 = vpop.f32.mrf.mxu0
        %v850 = vadd.f32 0.0, %v849
        %v851 = vpop.f32.mrf.mxu0
        %852 = vdwg.mxu0
        %853 = vrot.lane.b32.xlu0 %v510, 112
        %v854 = vpop.permute.xlu0 %853
        %855 = vrot.lane.b32.xlu0 %v506, 80
        %v856 = vpop.permute.xlu0 %855
        %v857 = vsel %vm514, %v854, 0
        %v859 = vsel %vm514, %v856, 0
        %861 = vmatprep.subr.mxu0 0.0
        %862 = vmatpush1.xpose.msra.mxu0 0.0
        %863 = vmatprep.subr.mxu0 0.0
        %864 = vmatpush1.xpose.msra.mxu0 0.0
        %865 = vmatprep.subr.mxu0 0.0
        %866 = vmatpush1.xpose.msra.mxu0 0.0
        %867 = vmatprep.subr.mxu0 0.0
        %868 = vmatpush1.xpose.msra.mxu0 0.0
        %869 = vmatprep.subr.mxu0 0.0
        %870 = vmatpush1.xpose.msra.mxu0 0.0
        %871 = vmatprep.subr.mxu0 0.0
        %872 = vmatpush1.xpose.msra.mxu0 0.0
        %873 = vmatprep.subr.mxu0 0.0
        %874 = vmatpush1.xpose.msra.mxu0 0.0
        %875 = vmatprep.subr.mxu0 0.0
        %876 = vmatpush1.xpose.msra.mxu0 0.0
        %877 = vmatprep.subr.mxu0 0.0
        %878 = vmatpush1.xpose.msra.mxu0 0.0
        %879 = vmatprep.subr.mxu0 0.0
        %880 = vmatpush1.xpose.msra.mxu0 0.0
        %881 = vmatprep.subr.mxu0 0.0
        %882 = vmatpush1.xpose.msra.mxu0 0.0
        %883 = vmatprep.subr.mxu0 0.0
        %884 = vmatpush1.xpose.msra.mxu0 0.0
        %885 = vmatprep.subr.mxu0 0.0
        %886 = vmatpush1.xpose.msra.mxu0 0.0
        %887 = vmatprep.subr.mxu0 0.0
        %888 = vmatpush1.xpose.msra.mxu0 0.0
        %889 = vmatprep.subr.mxu0 0.0
        %890 = vmatpush1.xpose.msra.mxu0 0.0
        %891 = vmatprep.subr.mxu0 0.0
        %892 = vmatpush1.xpose.msra.mxu0 %v859
        %893 = vmatprep.subr.mxu0 0.0
        %894 = vmatpush2.xpose.msra.mxu0 0.0
        %895 = vmatprep.subr.mxu0 0.0
        %896 = vmatpush2.xpose.msra.mxu0 0.0
        %897 = vmatprep.subr.mxu0 0.0
        %898 = vmatpush2.xpose.msra.mxu0 0.0
        %899 = vmatprep.subr.mxu0 0.0
        %900 = vmatpush2.xpose.msra.mxu0 0.0
        %901 = vmatprep.subr.mxu0 0.0
        %902 = vmatpush2.xpose.msra.mxu0 0.0
        %903 = vmatprep.subr.mxu0 0.0
        %904 = vmatpush2.xpose.msra.mxu0 0.0
        %905 = vmatprep.subr.mxu0 0.0
        %906 = vmatpush2.xpose.msra.mxu0 0.0
        %907 = vmatprep.subr.mxu0 0.0
        %908 = vmatpush2.xpose.msra.mxu0 0.0
        %909 = vmatprep.subr.mxu0 0.0
        %910 = vmatpush2.xpose.msra.mxu0 0.0
        %911 = vmatprep.subr.mxu0 0.0
        %912 = vmatpush2.xpose.msra.mxu0 0.0
        %913 = vmatprep.subr.mxu0 0.0
        %914 = vmatpush2.xpose.msra.mxu0 0.0
        %915 = vmatprep.subr.mxu0 0.0
        %916 = vmatpush2.xpose.msra.mxu0 0.0
        %917 = vmatprep.subr.mxu0 0.0
        %918 = vmatpush2.xpose.msra.mxu0 0.0
        %919 = vmatprep.subr.mxu0 0.0
        %920 = vmatpush2.xpose.msra.mxu0 0.0
        %921 = vmatprep.subr.mxu0 0.0
        %922 = vmatpush2.xpose.msra.mxu0 0.0
        %923 = vmatprep.subr.mxu0 0.0
        %924 = vmatpush2.xpose.msra.mxu0 0.0
        %925 = vmatprep.mubr.f32.mxu0 0.0
        %926 = vmatmul.mubr.f32.gmra.mxu0 %v857
        %v927 = vpop.f32.mrf.mxu0
        %v928 = vadd.f32 0.0, %v927
        %v929 = vpop.f32.mrf.mxu0
        %930 = vdwg.mxu0
        %v931 = vsel %vm595, -1e+09, %v928
        %v932 = vsel %vm514, %v931, -inf
        %933 = vmax.xlane.f32.xlu0 %v932
        %v934 = vpop.xlane.xlu0 %933
        %v935 = vsub.f32 %v931, %v934
        %v936 = vmul.f32 %v935, 1.442695
        %v937 = vpow.pop %v936
        %v938 = vsel %vm514, %v937, 0.0
        %939 = vadd.xlane.f32.xlu0 %v938
        %v940 = vpop.xlane.xlu0 %939
        %v941 = vrcp.pop %v940
        %v942 = vmul.f32 %v937, %v941
        %s943 = scalar_lea.vmem %s421, 16 [#allocation11]
        %944 = vst.msk [vmem:[%s943] sm:$0xff] %vm514, %v942
        %945 = vrot.lane.b32.xlu0 %v506, 48
        %v946 = vpop.permute.xlu0 %945
        %v949 = vsel %vm514, %v942, 0
        %951 = vmatprep.subr.mxu0 0.0
        %952 = vmatpush1.msra.mxu0 0.0
        %953 = vmatprep.subr.mxu0 0.0
        %954 = vmatpush1.msra.mxu0 0.0
        %955 = vmatprep.subr.mxu0 0.0
        %956 = vmatpush1.msra.mxu0 0.0
        %957 = vmatprep.subr.mxu0 0.0
        %958 = vmatpush1.msra.mxu0 0.0
        %959 = vmatprep.subr.mxu0 0.0
        %960 = vmatpush1.msra.mxu0 0.0
        %961 = vmatprep.subr.mxu0 0.0
        %962 = vmatpush1.msra.mxu0 0.0
        %963 = vmatprep.subr.mxu0 0.0
        %964 = vmatpush1.msra.mxu0 0.0
        %965 = vmatprep.subr.mxu0 0.0
        %966 = vmatpush1.msra.mxu0 0.0
        %967 = vmatprep.subr.mxu0 0.0
        %968 = vmatpush1.msra.mxu0 0.0
        %969 = vmatprep.subr.mxu0 0.0
        %970 = vmatpush1.msra.mxu0 0.0
        %971 = vmatprep.subr.mxu0 0.0
        %972 = vmatpush1.msra.mxu0 0.0
        %973 = vmatprep.subr.mxu0 0.0
        %974 = vmatpush1.msra.mxu0 0.0
        %975 = vmatprep.subr.mxu0 0.0
        %976 = vmatpush1.msra.mxu0 0.0
        %977 = vmatprep.subr.mxu0 0.0
        %978 = vmatpush1.msra.mxu0 0.0
        %979 = vmatprep.subr.mxu0 0.0
        %980 = vmatpush1.msra.mxu0 0.0
        %981 = vmatprep.subr.mxu0 0.0
        %982 = vmatpush1.msra.mxu0 %v946
        %983 = vmatprep.subr.mxu0 0.0
        %984 = vmatpush2.msra.mxu0 0.0
        %985 = vmatprep.subr.mxu0 0.0
        %986 = vmatpush2.msra.mxu0 0.0
        %987 = vmatprep.subr.mxu0 0.0
        %988 = vmatpush2.msra.mxu0 0.0
        %989 = vmatprep.subr.mxu0 0.0
        %990 = vmatpush2.msra.mxu0 0.0
        %991 = vmatprep.subr.mxu0 0.0
        %992 = vmatpush2.msra.mxu0 0.0
        %993 = vmatprep.subr.mxu0 0.0
        %994 = vmatpush2.msra.mxu0 0.0
        %995 = vmatprep.subr.mxu0 0.0
        %996 = vmatpush2.msra.mxu0 0.0
        %997 = vmatprep.subr.mxu0 0.0
        %998 = vmatpush2.msra.mxu0 0.0
        %999 = vmatprep.subr.mxu0 0.0
        %1000 = vmatpush2.msra.mxu0 0.0
        %1001 = vmatprep.subr.mxu0 0.0
        %1002 = vmatpush2.msra.mxu0 0.0
        %1003 = vmatprep.subr.mxu0 0.0
        %1004 = vmatpush2.msra.mxu0 0.0
        %1005 = vmatprep.subr.mxu0 0.0
        %1006 = vmatpush2.msra.mxu0 0.0
        %1007 = vmatprep.subr.mxu0 0.0
        %1008 = vmatpush2.msra.mxu0 0.0
        %1009 = vmatprep.subr.mxu0 0.0
        %1010 = vmatpush2.msra.mxu0 0.0
        %1011 = vmatprep.subr.mxu0 0.0
        %1012 = vmatpush2.msra.mxu0 0.0
        %1013 = vmatprep.subr.mxu0 0.0
        %1014 = vmatpush2.msra.mxu0 0.0
        %1015 = vmatprep.mubr.f32.mxu0 0.0
        %1016 = vmatmul.mubr.f32.gmra.mxu0 %v949
        %v1017 = vpop.f32.mrf.mxu0
        %v1018 = vadd.f32 0.0, %v1017
        %v1019 = vpop.f32.mrf.mxu0
        %1020 = vdwg.mxu0
        %1021 = vrot.lane.b32.xlu0 %v510, 104
        %v1022 = vpop.permute.xlu0 %1021
        %1023 = vrot.lane.b32.xlu0 %v506, 72
        %v1024 = vpop.permute.xlu0 %1023
        %v1025 = vsel %vm514, %v1022, 0
        %v1027 = vsel %vm514, %v1024, 0
        %1029 = vmatprep.subr.mxu0 0.0
        %1030 = vmatpush1.xpose.msra.mxu0 0.0
        %1031 = vmatprep.subr.mxu0 0.0
        %1032 = vmatpush1.xpose.msra.mxu0 0.0
        %1033 = vmatprep.subr.mxu0 0.0
        %1034 = vmatpush1.xpose.msra.mxu0 0.0
        %1035 = vmatprep.subr.mxu0 0.0
        %1036 = vmatpush1.xpose.msra.mxu0 0.0
        %1037 = vmatprep.subr.mxu0 0.0
        %1038 = vmatpush1.xpose.msra.mxu0 0.0
        %1039 = vmatprep.subr.mxu0 0.0
        %1040 = vmatpush1.xpose.msra.mxu0 0.0
        %1041 = vmatprep.subr.mxu0 0.0
        %1042 = vmatpush1.xpose.msra.mxu0 0.0
        %1043 = vmatprep.subr.mxu0 0.0
        %1044 = vmatpush1.xpose.msra.mxu0 0.0
        %1045 = vmatprep.subr.mxu0 0.0
        %1046 = vmatpush1.xpose.msra.mxu0 0.0
        %1047 = vmatprep.subr.mxu0 0.0
        %1048 = vmatpush1.xpose.msra.mxu0 0.0
        %1049 = vmatprep.subr.mxu0 0.0
        %1050 = vmatpush1.xpose.msra.mxu0 0.0
        %1051 = vmatprep.subr.mxu0 0.0
        %1052 = vmatpush1.xpose.msra.mxu0 0.0
        %1053 = vmatprep.subr.mxu0 0.0
        %1054 = vmatpush1.xpose.msra.mxu0 0.0
        %1055 = vmatprep.subr.mxu0 0.0
        %1056 = vmatpush1.xpose.msra.mxu0 0.0
        %1057 = vmatprep.subr.mxu0 0.0
        %1058 = vmatpush1.xpose.msra.mxu0 0.0
        %1059 = vmatprep.subr.mxu0 0.0
        %1060 = vmatpush1.xpose.msra.mxu0 %v1027
        %1061 = vmatprep.subr.mxu0 0.0
        %1062 = vmatpush2.xpose.msra.mxu0 0.0
        %1063 = vmatprep.subr.mxu0 0.0
        %1064 = vmatpush2.xpose.msra.mxu0 0.0
        %1065 = vmatprep.subr.mxu0 0.0
        %1066 = vmatpush2.xpose.msra.mxu0 0.0
        %1067 = vmatprep.subr.mxu0 0.0
        %1068 = vmatpush2.xpose.msra.mxu0 0.0
        %1069 = vmatprep.subr.mxu0 0.0
        %1070 = vmatpush2.xpose.msra.mxu0 0.0
        %1071 = vmatprep.subr.mxu0 0.0
        %1072 = vmatpush2.xpose.msra.mxu0 0.0
        %1073 = vmatprep.subr.mxu0 0.0
        %1074 = vmatpush2.xpose.msra.mxu0 0.0
        %1075 = vmatprep.subr.mxu0 0.0
        %1076 = vmatpush2.xpose.msra.mxu0 0.0
        %1077 = vmatprep.subr.mxu0 0.0
        %1078 = vmatpush2.xpose.msra.mxu0 0.0
        %1079 = vmatprep.subr.mxu0 0.0
        %1080 = vmatpush2.xpose.msra.mxu0 0.0
        %1081 = vmatprep.subr.mxu0 0.0
        %1082 = vmatpush2.xpose.msra.mxu0 0.0
        %1083 = vmatprep.subr.mxu0 0.0
        %1084 = vmatpush2.xpose.msra.mxu0 0.0
        %1085 = vmatprep.subr.mxu0 0.0
        %1086 = vmatpush2.xpose.msra.mxu0 0.0
        %1087 = vmatprep.subr.mxu0 0.0
        %1088 = vmatpush2.xpose.msra.mxu0 0.0
        %1089 = vmatprep.subr.mxu0 0.0
        %1090 = vmatpush2.xpose.msra.mxu0 0.0
        %1091 = vmatprep.subr.mxu0 0.0
        %1092 = vmatpush2.xpose.msra.mxu0 0.0
        %1093 = vmatprep.mubr.f32.mxu0 0.0
        %1094 = vmatmul.mubr.f32.gmra.mxu0 %v1025
        %v1095 = vpop.f32.mrf.mxu0
        %v1096 = vadd.f32 0.0, %v1095
        %v1097 = vpop.f32.mrf.mxu0
        %1098 = vdwg.mxu0
        %v1099 = vsel %vm595, -1e+09, %v1096
        %v1100 = vsel %vm514, %v1099, -inf
        %1101 = vmax.xlane.f32.xlu0 %v1100
        %v1102 = vpop.xlane.xlu0 %1101
        %v1103 = vsub.f32 %v1099, %v1102
        %v1104 = vmul.f32 %v1103, 1.442695
        %v1105 = vpow.pop %v1104
        %v1106 = vsel %vm514, %v1105, 0.0
        %1107 = vadd.xlane.f32.xlu0 %v1106
        %v1108 = vpop.xlane.xlu0 %1107
        %v1109 = vrcp.pop %v1108
        %v1110 = vmul.f32 %v1105, %v1109
        %s1111 = scalar_lea.vmem %s421, 24 [#allocation11]
        %1112 = vst.msk [vmem:[%s1111] sm:$0xff] %vm514, %v1110
        %1113 = vrot.lane.b32.xlu0 %v506, 40
        %v1114 = vpop.permute.xlu0 %1113
        %v1117 = vsel %vm514, %v1110, 0
        %1119 = vmatprep.subr.mxu0 0.0
        %1120 = vmatpush1.msra.mxu0 0.0
        %1121 = vmatprep.subr.mxu0 0.0
        %1122 = vmatpush1.msra.mxu0 0.0
        %1123 = vmatprep.subr.mxu0 0.0
        %1124 = vmatpush1.msra.mxu0 0.0
        %1125 = vmatprep.subr.mxu0 0.0
        %1126 = vmatpush1.msra.mxu0 0.0
        %1127 = vmatprep.subr.mxu0 0.0
        %1128 = vmatpush1.msra.mxu0 0.0
        %1129 = vmatprep.subr.mxu0 0.0
        %1130 = vmatpush1.msra.mxu0 0.0
        %1131 = vmatprep.subr.mxu0 0.0
        %1132 = vmatpush1.msra.mxu0 0.0
        %1133 = vmatprep.subr.mxu0 0.0
        %1134 = vmatpush1.msra.mxu0 0.0
        %1135 = vmatprep.subr.mxu0 0.0
        %1136 = vmatpush1.msra.mxu0 0.0
        %1137 = vmatprep.subr.mxu0 0.0
        %1138 = vmatpush1.msra.mxu0 0.0
        %1139 = vmatprep.subr.mxu0 0.0
        %1140 = vmatpush1.msra.mxu0 0.0
        %1141 = vmatprep.subr.mxu0 0.0
        %1142 = vmatpush1.msra.mxu0 0.0
        %1143 = vmatprep.subr.mxu0 0.0
        %1144 = vmatpush1.msra.mxu0 0.0
        %1145 = vmatprep.subr.mxu0 0.0
        %1146 = vmatpush1.msra.mxu0 0.0
        %1147 = vmatprep.subr.mxu0 0.0
        %1148 = vmatpush1.msra.mxu0 0.0
        %1149 = vmatprep.subr.mxu0 0.0
        %1150 = vmatpush1.msra.mxu0 %v1114
        %1151 = vmatprep.subr.mxu0 0.0
        %1152 = vmatpush2.msra.mxu0 0.0
        %1153 = vmatprep.subr.mxu0 0.0
        %1154 = vmatpush2.msra.mxu0 0.0
        %1155 = vmatprep.subr.mxu0 0.0
        %1156 = vmatpush2.msra.mxu0 0.0
        %1157 = vmatprep.subr.mxu0 0.0
        %1158 = vmatpush2.msra.mxu0 0.0
        %1159 = vmatprep.subr.mxu0 0.0
        %1160 = vmatpush2.msra.mxu0 0.0
        %1161 = vmatprep.subr.mxu0 0.0
        %1162 = vmatpush2.msra.mxu0 0.0
        %1163 = vmatprep.subr.mxu0 0.0
        %1164 = vmatpush2.msra.mxu0 0.0
        %1165 = vmatprep.subr.mxu0 0.0
        %1166 = vmatpush2.msra.mxu0 0.0
        %1167 = vmatprep.subr.mxu0 0.0
        %1168 = vmatpush2.msra.mxu0 0.0
        %1169 = vmatprep.subr.mxu0 0.0
        %1170 = vmatpush2.msra.mxu0 0.0
        %1171 = vmatprep.subr.mxu0 0.0
        %1172 = vmatpush2.msra.mxu0 0.0
        %1173 = vmatprep.subr.mxu0 0.0
        %1174 = vmatpush2.msra.mxu0 0.0
        %1175 = vmatprep.subr.mxu0 0.0
        %1176 = vmatpush2.msra.mxu0 0.0
        %1177 = vmatprep.subr.mxu0 0.0
        %1178 = vmatpush2.msra.mxu0 0.0
        %1179 = vmatprep.subr.mxu0 0.0
        %1180 = vmatpush2.msra.mxu0 0.0
        %1181 = vmatprep.subr.mxu0 0.0
        %1182 = vmatpush2.msra.mxu0 0.0
        %1183 = vmatprep.mubr.f32.mxu0 0.0
        %1184 = vmatmul.mubr.f32.gmra.mxu0 %v1117
        %v1185 = vpop.f32.mrf.mxu0
        %v1186 = vadd.f32 0.0, %v1185
        %v1187 = vpop.f32.mrf.mxu0
        %1188 = vdwg.mxu0
        %1190 = vrot.lane.b32.xlu0 %v850, 8
        %v1191 = vpop.permute.xlu0 %1190
        %1194 = vrot.lane.b32.xlu0 %v1018, 16
        %v1195 = vpop.permute.xlu0 %1194
        %1198 = vrot.lane.b32.xlu0 %v1186, 24
        %v1199 = vpop.permute.xlu0 %1198
        %v1201 = vsel %vm514, %v682, %v1191
        %vm1202 = vcmask 130048
        %v1203 = vsel %vm1202, %v1201, %v1195
        %vm1204 = vcmask 195584
        %v1205 = vsel %vm1204, %v1203, %v1199
        %v1206 = vld [vmem:[#allocation8] sm:$0xff]
        %v1207 = vld [vmem:[#allocation8 + $0x8] sm:$0xff]
        %v1208 = vld [vmem:[#allocation8 + $0x10] sm:$0xff]
        %v1209 = vld [vmem:[#allocation8 + $0x18] sm:$0xff]
        %v1210 = vld [vmem:[%s5] sm:$0x1]
        %v1212 = vlaneseq
        %v1213 = vshrl.u32 %v1212, 7
        %v1214 = vsub.s32 0, %v1213
        %v1215 = vrot.slane %v1210, %v1214
        %v1218 = vsel %vm435, %v1205, 0
        %1220 = vmatprep.subr.mxu0 0.0
        %1221 = vmatpush1.msra.mxu0 0.0
        %1222 = vmatprep.subr.mxu0 0.0
        %1223 = vmatpush1.msra.mxu0 0.0
        %1224 = vmatprep.subr.mxu0 0.0
        %1225 = vmatpush1.msra.mxu0 0.0
        %1226 = vmatprep.subr.mxu0 0.0
        %1227 = vmatpush1.msra.mxu0 0.0
        %1228 = vmatprep.subr.mxu0 0.0
        %1229 = vmatpush1.msra.mxu0 0.0
        %1230 = vmatprep.subr.mxu0 0.0
        %1231 = vmatpush1.msra.mxu0 0.0
        %1232 = vmatprep.subr.mxu0 0.0
        %1233 = vmatpush1.msra.mxu0 0.0
        %1234 = vmatprep.subr.mxu0 0.0
        %1235 = vmatpush1.msra.mxu0 0.0
        %1236 = vmatprep.subr.mxu0 0.0
        %1237 = vmatpush1.msra.mxu0 0.0
        %1238 = vmatprep.subr.mxu0 0.0
        %1239 = vmatpush1.msra.mxu0 0.0
        %1240 = vmatprep.subr.mxu0 0.0
        %1241 = vmatpush1.msra.mxu0 0.0
        %1242 = vmatprep.subr.mxu0 0.0
        %1243 = vmatpush1.msra.mxu0 0.0
        %1244 = vmatprep.subr.mxu0 0.0
        %1245 = vmatpush1.msra.mxu0 %v1209
        %1246 = vmatprep.subr.mxu0 0.0
        %1247 = vmatpush1.msra.mxu0 %v1208
        %1248 = vmatprep.subr.mxu0 0.0
        %1249 = vmatpush1.msra.mxu0 %v1207
        %1250 = vmatprep.subr.mxu0 0.0
        %1251 = vmatpush1.msra.mxu0 %v1206
        %1252 = vmatprep.subr.mxu0 0.0
        %1253 = vmatpush2.msra.mxu0 0.0
        %1254 = vmatprep.subr.mxu0 0.0
        %1255 = vmatpush2.msra.mxu0 0.0
        %1256 = vmatprep.subr.mxu0 0.0
        %1257 = vmatpush2.msra.mxu0 0.0
        %1258 = vmatprep.subr.mxu0 0.0
        %1259 = vmatpush2.msra.mxu0 0.0
        %1260 = vmatprep.subr.mxu0 0.0
        %1261 = vmatpush2.msra.mxu0 0.0
        %1262 = vmatprep.subr.mxu0 0.0
        %1263 = vmatpush2.msra.mxu0 0.0
        %1264 = vmatprep.subr.mxu0 0.0
        %1265 = vmatpush2.msra.mxu0 0.0
        %1266 = vmatprep.subr.mxu0 0.0
        %1267 = vmatpush2.msra.mxu0 0.0
        %1268 = vmatprep.subr.mxu0 0.0
        %1269 = vmatpush2.msra.mxu0 0.0
        %1270 = vmatprep.subr.mxu0 0.0
        %1271 = vmatpush2.msra.mxu0 0.0
        %1272 = vmatprep.subr.mxu0 0.0
        %1273 = vmatpush2.msra.mxu0 0.0
        %1274 = vmatprep.subr.mxu0 0.0
        %1275 = vmatpush2.msra.mxu0 0.0
        %1276 = vmatprep.subr.mxu0 0.0
        %1277 = vmatpush2.msra.mxu0 0.0
        %1278 = vmatprep.subr.mxu0 0.0
        %1279 = vmatpush2.msra.mxu0 0.0
        %1280 = vmatprep.subr.mxu0 0.0
        %1281 = vmatpush2.msra.mxu0 0.0
        %1282 = vmatprep.subr.mxu0 0.0
        %1283 = vmatpush2.msra.mxu0 0.0
        %1284 = vmatprep.mubr.f32.mxu0 0.0
        %1285 = vmatmul.mubr.f32.gmra.mxu0 %v1218
        %v1286 = vpop.f32.mrf.mxu0
        %v1287 = vadd.f32 %v1215, %v1286
        %v1288 = vpop.f32.mrf.mxu0
        %1289 = vdwg.mxu0
        %v1290 = vadd.f32 %v1287, %v422
        %v1291 = vsel %vm435, %v1290, 0.0
        %1292 = vadd.xlane.f32.xlu0 %v1291
        %v1293 = vpop.xlane.xlu0 %1292
        %v1294 = vrcp.pop 32.0
        %v1295 = vmul.f32 %v1293, %v1294
        %v1296 = vsub.f32 %v1290, %v1295
        %v1297 = vmul.f32 %v1296, %v1296
        %v1298 = vsel %vm435, %v1297, 0.0
        %1299 = vadd.xlane.f32.xlu0 %v1298
        %v1300 = vpop.xlane.xlu0 %1299
        %v1301 = vmul.f32 %v1300, %v1294
        %v1302 = vadd.f32 %v1301, 1e-05
        %v1303 = vrsqrt.pop %v1302
        %v1304 = vmul.f32 %v1296, %v1303
        %v1305 = vld [vmem:[%s6] sm:$0x1]
        %v1307 = vlaneseq
        %v1308 = vshrl.u32 %v1307, 7
        %v1309 = vsub.s32 0, %v1308
        %v1310 = vrot.slane %v1305, %v1309
        %v1312 = vmul.f32 %v1304, %v1310
        %v1313 = vld [vmem:[%s7] sm:$0x1]
        %v1315 = vlaneseq
        %v1316 = vshrl.u32 %v1315, 7
        %v1317 = vsub.s32 0, %v1316
        %v1318 = vrot.slane %v1313, %v1317
        %v1320 = vadd.f32 %v1312, %v1318
        %1321 = vst.msk [vmem:[%s414] sm:$0xff] %vm435, %v1320
        %s1322 = sand.u32 %s220, 1
        %s1323 = scalar_lea.sflag [#allocation4], %s1322
        %s1324 = sand.u32 %s220, 1
        %s1325 = smul.addr %s1324, 8
        %s1326 = scalar_lea.vmem [#allocation10], %s1325
        %s1327 = sand.u32 %s246, 1
        %s1328 = scalar_lea.sflag [#allocation12], %s1327
        %s1329 = sand.u32 %s246, 1
        %s1330 = smul.addr %s1329, 32
        %s1331 = scalar_lea.vmem [#allocation11], %s1330
        // Predicated region
        $region69: #{tpu_custom_call.1} parent=51 // pred_check
          %p1332 = pneg %p230
        $region70: #{tpu_custom_call.1} parent=51 // pred_check_branch
          %1334 = sbr.rel (%p1332) target = $region72
        $region71: #{tpu_custom_call.1} parent=51 // pred_region
          %s1336 = ssub.s32 128, 128
          %1337 = vsyncadd %s1323, %s1336
          %s1338 = smul.addr %s34, 128
          %s1339 = scalar_lea.hbm %s8, %s1338
          %s1341 = sshll.u32 %s1326, 4
          %s1342 = int_to_ptr.vmem [resolvable:$true] %s1341
          %1344 = dma.vmem_to_hbm [thread:$0]  %s1342, 128, %s1339, %s1323
        $region72: #{tpu_custom_call.1} parent=51 // pred_fallthru
          _
        // Predicated region
        $region73: #{tpu_custom_call.1} parent=51 // pred_check
          %p1345 = pneg %p256
        $region74: #{tpu_custom_call.1} parent=51 // pred_check_branch
          %1347 = sbr.rel (%p1345) target = $region76
        $region75: #{tpu_custom_call.1} parent=51 // pred_region
          %s1349 = ssub.s32 512, 512
          %1350 = vsyncadd %s1328, %s1349
          %s1351 = smul.addr %s34, 4
          %s1352 = smul.addr %s1351, 128
          %s1353 = scalar_lea.hbm %s9, %s1352
          %s1354 = sshll.u32 %s1331, 4
          %s1355 = int_to_ptr.vmem [resolvable:$true] %s1354
          %1360 = dma.vmem_to_hbm [thread:$0]  %s1355, 512, %s1353, %s1328, 128, 128, 8
        $region76: #{tpu_custom_call.1} parent=51 // pred_fallthru
          _
      $region52: #{tpu_custom_call.1} parent=5 // pred_fallthru
        _
      %p1361 = scmp.le.s32.totalorder 2, %s29
      // Predicated region
      $region77: #{tpu_custom_call.1} parent=5 // pred_check
        %p1362 = pneg %p1361
      $region78: #{tpu_custom_call.1} parent=5 // pred_check_branch
        %1364 = sbr.rel (%p1362) target = $region80
      $region79: #{tpu_custom_call.1} parent=5 // pred_region
        %s1365 = ssub.s32 %s29, 2
        // Predicated region
        $region81: #{tpu_custom_call.1} parent=79 // pred_check
          %p1366 = pneg %p236
        $region82: #{tpu_custom_call.1} parent=79 // pred_check_branch
          %1368 = sbr.rel (%p1366) target = $region84
        $region83: #{tpu_custom_call.1} parent=79 // pred_region
          %s1369 = sand.u32 %s221, 1
          %s1370 = scalar_lea.sflag [#allocation4], %s1369
          %s1371 = sand.u32 %s221, 1
          %s1372 = smul.addr %s1371, 8
          %s1373 = scalar_lea.vmem [#allocation10], %s1372
          %1374 = dma.done %s1370, 128
        $region84: #{tpu_custom_call.1} parent=79 // pred_fallthru
          _
        // Predicated region
        $region85: #{tpu_custom_call.1} parent=79 // pred_check
          %p1375 = pneg %p262
        $region86: #{tpu_custom_call.1} parent=79 // pred_check_branch
          %1377 = sbr.rel (%p1375) target = $region88
        $region87: #{tpu_custom_call.1} parent=79 // pred_region
          %s1378 = sand.u32 %s247, 1
          %s1379 = scalar_lea.sflag [#allocation12], %s1378
          %s1380 = sand.u32 %s247, 1
          %s1381 = smul.addr %s1380, 32
          %s1382 = scalar_lea.vmem [#allocation11], %s1381
          %1383 = dma.done %s1379, 512
        $region88: #{tpu_custom_call.1} parent=79 // pred_fallthru
          _
      $region80: #{tpu_custom_call.1} parent=5 // pred_fallthru
        _
    $region6: #{tpu_custom_call.1} parent=1 // loop_footer
      %s33 = sadd.s32 1, %s29
    $region7: #{tpu_custom_call.1} parent=1 // loop_footer_branch
      %28 = sbr.rel target = $region3
    $region8: #{tpu_custom_call.1} parent=1 // loop_exit
      _
    %1384 = vsyncpa [#allocation3], 1
    %s1385 = scalar_lea.sflag [#allocation3], 1
    %1386 = vsyncpa %s1385, 1
    %1387 = vsyncpa [#allocation6], 1
    %s1388 = scalar_lea.sflag [#allocation6], 1
    %1389 = vsyncpa %s1388, 1
    %1390 = vsyncpa [#allocation9], 1
    %1391 = vsyncpa [#allocation4], 1
    %s1392 = scalar_lea.sflag [#allocation4], 1
    %1393 = vsyncpa %s1392, 1
    %1394 = vsyncpa [#allocation12], 1
    %s1395 = scalar_lea.sflag [#allocation12], 1
    %1396 = vsyncpa %s1395, 1

</llo_original>
